<compile_context>
chip_gen: v7x
topology: tpu7x:2x2x1
jax: 0.10.0
libtpu: 0.0.40
codegen_flags: <defaults>
</compile_context>

<pallas_src>
import math

import jax
import jax.numpy as jnp
from jax.experimental import pallas as pl
from jax.experimental.pallas import tpu as pltpu

NEG_SLOPE = 0.1   # LeakyReLU negative slope
OUT_PAD = 128     # lane-dense padded width of the final (1-wide) layer


def _disc_kernel(x_ref, w1_ref, b1_ref, w2_ref, b2_ref, w3_ref, b3_ref, o_ref):
    # fc1: (B, 968) @ (968, 400) -> (B, 400); bf16 operands, f32 accumulation.
    h1 = jnp.dot(x_ref[...].astype(jnp.bfloat16), w1_ref[...],
                 preferred_element_type=jnp.float32)
    h1 = h1 + b1_ref[...]
    # fc2: (B, 400) @ (400, 50) -> (B, 50)
    h2 = jnp.dot(h1.astype(jnp.bfloat16), w2_ref[...],
                 preferred_element_type=jnp.float32)
    h2 = h2 + b2_ref[...]
    # fc3: (B, 50) @ (50, 128-padded) -> (B, 128); only column 0 is real.
    h3 = jnp.dot(h2.astype(jnp.bfloat16), w3_ref[...],
                 preferred_element_type=jnp.float32)
    h3 = h3 + b3_ref[...]
    # LeakyReLU(0.1), applied only after fc3 (matches the PyTorch forward).
    o_ref[...] = jnp.where(h3 >= 0.0, h3, NEG_SLOPE * h3).astype(o_ref.dtype)


@jax.jit
def discriminator_forward(x, params):
    """x: (B, 968) float32 -> (B, 1) float32."""
    w1, b1, w2, b2, w3, b3 = params
    B = x.shape[0]

    vmem_spec = pl.BlockSpec(memory_space=pltpu.MemorySpace.VMEM)

    out_padded = pl.pallas_call(
        _disc_kernel,
        out_shape=jax.ShapeDtypeStruct((B, OUT_PAD), jnp.float32),
        in_specs=[vmem_spec] * 7,
        out_specs=vmem_spec,
    )(x, w1, b1, w2, b2, w3, b3)

    # Only column 0 of the lane-padded head is meaningful.
    return out_padded[:, :1]


def init_params(key):
    """Deterministic init mimicking PyTorch nn.Linear (uniform +/- 1/sqrt(fan_in)).

    Weights are stored (in, out) in bfloat16; biases (1, out) in float32.
    The final layer is zero-padded from 1 to OUT_PAD output columns.
    """
    dims = [(968, 400), (400, 50), (50, 1)]
    keys = jax.random.split(key, 2 * len(dims))
    params = []
    for i, (fan_in, fan_out) in enumerate(dims):
        bound = 1.0 / math.sqrt(fan_in)
        w = jax.random.uniform(
            keys[2 * i], (fan_in, fan_out), jnp.float32, -bound, bound)
        b = jax.random.uniform(
            keys[2 * i + 1], (1, fan_out), jnp.float32, -bound, bound)
        if i == len(dims) - 1:  # pad the 1-wide head to a lane-dense width
            w = jnp.pad(w, ((0, 0), (0, OUT_PAD - fan_out)))
            b = jnp.pad(b, ((0, 0), (0, OUT_PAD - fan_out)))
        params += [w.astype(jnp.bfloat16), b]
    return tuple(params)


def _reference_forward(x, params):
    """Pure-JAX reference mirroring the kernel's bf16-weight / f32-accum math."""
    w1, b1, w2, b2, w3, b3 = params
    h = jnp.dot(x.astype(jnp.bfloat16), w1,
                preferred_element_type=jnp.float32) + b1
    h = jnp.dot(h.astype(jnp.bfloat16), w2,
                preferred_element_type=jnp.float32) + b2
    h = jnp.dot(h.astype(jnp.bfloat16), w3,
                preferred_element_type=jnp.float32) + b3
    h = jnp.where(h >= 0.0, h, NEG_SLOPE * h)
    return h[:, :1]


if __name__ == "__main__":
    key = jax.random.PRNGKey(0)
    k_params, k_x = jax.random.split(key)

    params = init_params(k_params)
    x = jax.random.normal(k_x, (8, 968), jnp.float32)  # batch=8, features=968

    out = discriminator_forward(x, params)
    out = jax.block_until_ready(out)

    ref = _reference_forward(x, params)
    assert out.shape == (8, 1), out.shape
    assert jnp.allclose(out, ref, atol=1e-3, rtol=1e-3), "mismatch vs reference"

    print("KERNEL_OK")
</pallas_src>

<mosaic_0001>
module attributes {stable_mosaic.version = 11 : i64} {
  func.func @_disc_kernel(%arg0: memref<8x968xf32, #tpu.memory_space<vmem>>, %arg1: memref<968x400xbf16, #tpu.memory_space<vmem>>, %arg2: memref<1x400xf32, #tpu.memory_space<vmem>>, %arg3: memref<400x50xbf16, #tpu.memory_space<vmem>>, %arg4: memref<1x50xf32, #tpu.memory_space<vmem>>, %arg5: memref<50x128xbf16, #tpu.memory_space<vmem>>, %arg6: memref<1x128xf32, #tpu.memory_space<vmem>>, %arg7: memref<8x128xf32, #tpu.memory_space<vmem>>) attributes {dimension_semantics = [], scalar_prefetch = 0 : i64, scratch_operands = 0 : i64, tpu.core_type = #tpu.core_type<tc>} {
    %c0 = arith.constant 0 : index
    %c0_0 = arith.constant 0 : index
    %0 = vector.load %arg0[%c0, %c0_0] : memref<8x968xf32, #tpu.memory_space<vmem>>, vector<8x968xf32>
    %1 = arith.truncf %0 : vector<8x968xf32> to vector<8x968xbf16>
    %c0_1 = arith.constant 0 : index
    %c0_2 = arith.constant 0 : index
    %2 = vector.load %arg1[%c0_1, %c0_2] : memref<968x400xbf16, #tpu.memory_space<vmem>>, vector<968x400xbf16>
    %cst = arith.constant dense<0.000000e+00> : vector<8x400xf32>
    %3 = tpu.matmul %1, %2, %cst {dimension_numbers = #tpu.dot_dimension_numbers<[1], [0], [0], [1], [0, 0, 1, 1], [], []>} : vector<8x968xbf16>, vector<968x400xbf16>, vector<8x400xf32> -> vector<8x400xf32>
    %c0_3 = arith.constant 0 : index
    %c0_4 = arith.constant 0 : index
    %4 = vector.load %arg2[%c0_3, %c0_4] : memref<1x400xf32, #tpu.memory_space<vmem>>, vector<1x400xf32>
    %5 = vector.broadcast %4 : vector<1x400xf32> to vector<8x400xf32>
    %6 = arith.addf %3, %5 : vector<8x400xf32>
    %7 = arith.truncf %6 : vector<8x400xf32> to vector<8x400xbf16>
    %c0_5 = arith.constant 0 : index
    %c0_6 = arith.constant 0 : index
    %8 = vector.load %arg3[%c0_5, %c0_6] : memref<400x50xbf16, #tpu.memory_space<vmem>>, vector<400x50xbf16>
    %cst_7 = arith.constant dense<0.000000e+00> : vector<8x50xf32>
    %9 = tpu.matmul %7, %8, %cst_7 {dimension_numbers = #tpu.dot_dimension_numbers<[1], [0], [0], [1], [0, 0, 1, 1], [], []>} : vector<8x400xbf16>, vector<400x50xbf16>, vector<8x50xf32> -> vector<8x50xf32>
    %c0_8 = arith.constant 0 : index
    %c0_9 = arith.constant 0 : index
    %10 = vector.load %arg4[%c0_8, %c0_9] : memref<1x50xf32, #tpu.memory_space<vmem>>, vector<1x50xf32>
    %11 = vector.broadcast %10 : vector<1x50xf32> to vector<8x50xf32>
    %12 = arith.addf %9, %11 : vector<8x50xf32>
    %13 = arith.truncf %12 : vector<8x50xf32> to vector<8x50xbf16>
    %c0_10 = arith.constant 0 : index
    %c0_11 = arith.constant 0 : index
    %14 = vector.load %arg5[%c0_10, %c0_11] : memref<50x128xbf16, #tpu.memory_space<vmem>>, vector<50x128xbf16>
    %cst_12 = arith.constant dense<0.000000e+00> : vector<8x128xf32>
    %15 = tpu.matmul %13, %14, %cst_12 {dimension_numbers = #tpu.dot_dimension_numbers<[1], [0], [0], [1], [0, 0, 1, 1], [], []>} : vector<8x50xbf16>, vector<50x128xbf16>, vector<8x128xf32> -> vector<8x128xf32>
    %c0_13 = arith.constant 0 : index
    %c0_14 = arith.constant 0 : index
    %16 = vector.load %arg6[%c0_13, %c0_14] : memref<1x128xf32, #tpu.memory_space<vmem>>, vector<1x128xf32>
    %17 = vector.broadcast %16 : vector<1x128xf32> to vector<8x128xf32>
    %18 = arith.addf %15, %17 : vector<8x128xf32>
    %cst_15 = arith.constant 0.000000e+00 : f32
    %19 = vector.broadcast %cst_15 : f32 to vector<8x128xf32>
    %20 = arith.cmpf oge, %18, %19 : vector<8x128xf32>
    %cst_16 = arith.constant 1.000000e-01 : f32
    %21 = vector.broadcast %cst_16 : f32 to vector<8x128xf32>
    %22 = arith.mulf %21, %18 : vector<8x128xf32>
    %23 = arith.select %20, %18, %22 : vector<8x128xi1>, vector<8x128xf32>
    %c0_17 = arith.constant 0 : index
    %c0_18 = arith.constant 0 : index
    %24 = vector.load %arg7[%c0_17, %c0_18] : memref<8x128xf32, #tpu.memory_space<vmem>>, vector<8x128xf32>
    tpu.vector_store %arg7[%c0_17, %c0_18], %23 {strides = array<i32>} : memref<8x128xf32, #tpu.memory_space<vmem>>, vector<8x128xf32>,
    return
  }
}

</mosaic_0001>

<llo_original>
// kernel: discriminator_forward.1
$region0: #{discriminator_forward.1}
  #allocation0 [shape = 'u32[]', space=smem, size = 0x4, offset = 0x4, fixed_abs, tag = 'smem constant byte address 0x4 - core index']
  #allocation1 [shape = 'u32[144,128]{1,0:T(1,128)}', space=vmem, size = 0x12000, scoped, tag = 'internal scratch']
  %s0 = inlined_call_operand.vmem [shape: f32[8,968], index: 0, kind: input, shape index: {}]
  %s1 = inlined_call_operand.vmem [shape: bf16[968,400], index: 1, kind: input, shape index: {}]
  %s2 = inlined_call_operand.vmem [shape: f32[1,400], index: 2, kind: input, shape index: {}]
  %s3 = inlined_call_operand.vmem [shape: bf16[400,50], index: 3, kind: input, shape index: {}]
  %s4 = inlined_call_operand.vmem [shape: f32[1,50], index: 4, kind: input, shape index: {}]
  %s5 = inlined_call_operand.vmem [shape: bf16[50,128], index: 5, kind: input, shape index: {}]
  %s6 = inlined_call_operand.vmem [shape: f32[1,128], index: 6, kind: input, shape index: {}]
  %s7 = inlined_call_operand.vmem [shape: f32[8,128], index: 7, kind: output, shape index: {}]
  %s8 = sld [smem:[#allocation0]]
  $region38: #{discriminator_forward.1} parent=0
    _
  %s10 = ssub.s32 1, %s8
  %s11 = scalar_select 0, %s10, %s8
  // Predicated region
  $region2: #{discriminator_forward.1} parent=0 // pred_check
    _
  $region3: #{discriminator_forward.1} parent=0 // pred_check_branch
    %13 = sbr.rel (0) target = $region5
  $region4: #{discriminator_forward.1} parent=0 // pred_region
    _
  $region5: #{discriminator_forward.1} parent=0 // pred_fallthru
    _
  // Predicated region
  $region6: #{discriminator_forward.1} parent=0 // pred_check
    _
  $region7: #{discriminator_forward.1} parent=0 // pred_check_branch
    %15 = sbr.rel (0) target = $region9
  $region8: #{discriminator_forward.1} parent=0 // pred_region
    _
  $region9: #{discriminator_forward.1} parent=0 // pred_fallthru
    _
  // Predicated region
  $region10: #{discriminator_forward.1} parent=0 // pred_check
    _
  $region11: #{discriminator_forward.1} parent=0 // pred_check_branch
    %17 = sbr.rel (0) target = $region13
  $region12: #{discriminator_forward.1} parent=0 // pred_region
    _
  $region13: #{discriminator_forward.1} parent=0 // pred_fallthru
    _
  // Predicated region
  $region14: #{discriminator_forward.1} parent=0 // pred_check
    _
  $region15: #{discriminator_forward.1} parent=0 // pred_check_branch
    %19 = sbr.rel (0) target = $region17
  $region16: #{discriminator_forward.1} parent=0 // pred_region
    _
  $region17: #{discriminator_forward.1} parent=0 // pred_fallthru
    _
  // Predicated region
  $region18: #{discriminator_forward.1} parent=0 // pred_check
    _
  $region19: #{discriminator_forward.1} parent=0 // pred_check_branch
    %21 = sbr.rel (0) target = $region21
  $region20: #{discriminator_forward.1} parent=0 // pred_region
    _
  $region21: #{discriminator_forward.1} parent=0 // pred_fallthru
    _
  // Predicated region
  $region22: #{discriminator_forward.1} parent=0 // pred_check
    _
  $region23: #{discriminator_forward.1} parent=0 // pred_check_branch
    %23 = sbr.rel (0) target = $region25
  $region24: #{discriminator_forward.1} parent=0 // pred_region
    _
  $region25: #{discriminator_forward.1} parent=0 // pred_fallthru
    _
  // Predicated region
  $region26: #{discriminator_forward.1} parent=0 // pred_check
    _
  $region27: #{discriminator_forward.1} parent=0 // pred_check_branch
    %25 = sbr.rel (0) target = $region29
  $region28: #{discriminator_forward.1} parent=0 // pred_region
    _
  $region29: #{discriminator_forward.1} parent=0 // pred_fallthru
    _
  %v27 = vld [vmem:[%s0] sm:$0xff]
  %v28 = vld [vmem:[%s0 + $0x8] sm:$0xff]
  %v29 = vld [vmem:[%s0 + $0x10] sm:$0xff]
  %v30 = vld [vmem:[%s0 + $0x18] sm:$0xff]
  %v31 = vld [vmem:[%s0 + $0x20] sm:$0xff]
  %v32 = vld [vmem:[%s0 + $0x28] sm:$0xff]
  %v33 = vld [vmem:[%s0 + $0x30] sm:$0xff]
  %v34 = vld [vmem:[%s0 + $0x38] sm:$0xff]
  %v35 = vpack.c.bf16 %v27, %v27
  %v36 = vpack.c.bf16 %v28, %v28
  %v37 = vpack.c.bf16 %v29, %v29
  %v38 = vpack.c.bf16 %v30, %v30
  %v39 = vpack.c.bf16 %v31, %v31
  %v40 = vpack.c.bf16 %v32, %v32
  %v41 = vpack.c.bf16 %v33, %v33
  %v42 = vpack.c.bf16 %v34, %v34
  %v43 = vld [vmem:[%s1] sm:$0xff]
  %v44 = vld [vmem:[%s1 + $0x8] sm:$0xff]
  %v45 = vld [vmem:[%s1 + $0x10] sm:$0xff]
  %v46 = vld [vmem:[%s1 + $0x18] sm:$0xff]
  %v47 = vld [vmem:[%s1 + $0x20] sm:$0xff]
  %v48 = vld [vmem:[%s1 + $0x28] sm:$0xff]
  %v49 = vld [vmem:[%s1 + $0x30] sm:$0xff]
  %v50 = vld [vmem:[%s1 + $0x38] sm:$0xff]
  %v51 = vld [vmem:[%s1 + $0x40] sm:$0xff]
  %v52 = vld [vmem:[%s1 + $0x48] sm:$0xff]
  %v53 = vld [vmem:[%s1 + $0x50] sm:$0xff]
  %v54 = vld [vmem:[%s1 + $0x58] sm:$0xff]
  %v55 = vld [vmem:[%s1 + $0x60] sm:$0xff]
  %v56 = vld [vmem:[%s1 + $0x68] sm:$0xff]
  %v57 = vld [vmem:[%s1 + $0x70] sm:$0xff]
  %v58 = vld [vmem:[%s1 + $0x78] sm:$0xff]
  %v59 = vld [vmem:[%s1 + $0x80] sm:$0xff]
  %v60 = vld [vmem:[%s1 + $0x88] sm:$0xff]
  %v61 = vld [vmem:[%s1 + $0x90] sm:$0xff]
  %v62 = vld [vmem:[%s1 + $0x98] sm:$0xff]
  %v63 = vld [vmem:[%s1 + $0xa0] sm:$0xff]
  %v64 = vld [vmem:[%s1 + $0xa8] sm:$0xff]
  %v65 = vld [vmem:[%s1 + $0xb0] sm:$0xff]
  %v66 = vld [vmem:[%s1 + $0xb8] sm:$0xff]
  %v67 = vld [vmem:[%s1 + $0xc0] sm:$0xff]
  %v68 = vld [vmem:[%s1 + $0xc8] sm:$0xff]
  %v69 = vld [vmem:[%s1 + $0xd0] sm:$0xff]
  %v70 = vld [vmem:[%s1 + $0xd8] sm:$0xff]
  %v71 = vld [vmem:[%s1 + $0xe0] sm:$0xff]
  %v72 = vld [vmem:[%s1 + $0xe8] sm:$0xff]
  %v73 = vld [vmem:[%s1 + $0xf0] sm:$0xff]
  %v74 = vld [vmem:[%s1 + $0xf8] sm:$0xff]
  %v75 = vld [vmem:[%s1 + $0x100] sm:$0xff]
  %v76 = vld [vmem:[%s1 + $0x108] sm:$0xff]
  %v77 = vld [vmem:[%s1 + $0x110] sm:$0xff]
  %v78 = vld [vmem:[%s1 + $0x118] sm:$0xff]
  %v79 = vld [vmem:[%s1 + $0x120] sm:$0xff]
  %v80 = vld [vmem:[%s1 + $0x128] sm:$0xff]
  %v81 = vld [vmem:[%s1 + $0x130] sm:$0xff]
  %v82 = vld [vmem:[%s1 + $0x138] sm:$0xff]
  %v83 = vld [vmem:[%s1 + $0x140] sm:$0xff]
  %v84 = vld [vmem:[%s1 + $0x148] sm:$0xff]
  %v85 = vld [vmem:[%s1 + $0x150] sm:$0xff]
  %v86 = vld [vmem:[%s1 + $0x158] sm:$0xff]
  %v87 = vld [vmem:[%s1 + $0x160] sm:$0xff]
  %v88 = vld [vmem:[%s1 + $0x168] sm:$0xff]
  %v89 = vld [vmem:[%s1 + $0x170] sm:$0xff]
  %v90 = vld [vmem:[%s1 + $0x178] sm:$0xff]
  %v91 = vld [vmem:[%s1 + $0x180] sm:$0xff]
  %v92 = vld [vmem:[%s1 + $0x188] sm:$0xff]
  %v93 = vld [vmem:[%s1 + $0x190] sm:$0xff]
  %v94 = vld [vmem:[%s1 + $0x198] sm:$0xff]
  %v95 = vld [vmem:[%s1 + $0x1a0] sm:$0xff]
  %v96 = vld [vmem:[%s1 + $0x1a8] sm:$0xff]
  %v97 = vld [vmem:[%s1 + $0x1b0] sm:$0xff]
  %v98 = vld [vmem:[%s1 + $0x1b8] sm:$0xff]
  %v99 = vld [vmem:[%s1 + $0x1c0] sm:$0xff]
  %v100 = vld [vmem:[%s1 + $0x1c8] sm:$0xff]
  %v101 = vld [vmem:[%s1 + $0x1d0] sm:$0xff]
  %v102 = vld [vmem:[%s1 + $0x1d8] sm:$0xff]
  %v103 = vld [vmem:[%s1 + $0x1e0] sm:$0xff]
  %v104 = vld [vmem:[%s1 + $0x1e8] sm:$0xff]
  %v105 = vld [vmem:[%s1 + $0x1f0] sm:$0xff]
  %v106 = vld [vmem:[%s1 + $0x1f8] sm:$0xff]
  %v107 = vld [vmem:[%s1 + $0x200] sm:$0xff]
  %v108 = vld [vmem:[%s1 + $0x208] sm:$0xff]
  %v109 = vld [vmem:[%s1 + $0x210] sm:$0xff]
  %v110 = vld [vmem:[%s1 + $0x218] sm:$0xff]
  %v111 = vld [vmem:[%s1 + $0x220] sm:$0xff]
  %v112 = vld [vmem:[%s1 + $0x228] sm:$0xff]
  %v113 = vld [vmem:[%s1 + $0x230] sm:$0xff]
  %v114 = vld [vmem:[%s1 + $0x238] sm:$0xff]
  %v115 = vld [vmem:[%s1 + $0x240] sm:$0xff]
  %v116 = vld [vmem:[%s1 + $0x248] sm:$0xff]
  %v117 = vld [vmem:[%s1 + $0x250] sm:$0xff]
  %v118 = vld [vmem:[%s1 + $0x258] sm:$0xff]
  %v119 = vld [vmem:[%s1 + $0x260] sm:$0xff]
  %v120 = vld [vmem:[%s1 + $0x268] sm:$0xff]
  %v121 = vld [vmem:[%s1 + $0x270] sm:$0xff]
  %v122 = vld [vmem:[%s1 + $0x278] sm:$0xff]
  %v123 = vld [vmem:[%s1 + $0x280] sm:$0xff]
  %v124 = vld [vmem:[%s1 + $0x288] sm:$0xff]
  %v125 = vld [vmem:[%s1 + $0x290] sm:$0xff]
  %v126 = vld [vmem:[%s1 + $0x298] sm:$0xff]
  %v127 = vld [vmem:[%s1 + $0x2a0] sm:$0xff]
  %v128 = vld [vmem:[%s1 + $0x2a8] sm:$0xff]
  %v129 = vld [vmem:[%s1 + $0x2b0] sm:$0xff]
  %v130 = vld [vmem:[%s1 + $0x2b8] sm:$0xff]
  %v131 = vld [vmem:[%s1 + $0x2c0] sm:$0xff]
  %v132 = vld [vmem:[%s1 + $0x2c8] sm:$0xff]
  %v133 = vld [vmem:[%s1 + $0x2d0] sm:$0xff]
  %v134 = vld [vmem:[%s1 + $0x2d8] sm:$0xff]
  %v135 = vld [vmem:[%s1 + $0x2e0] sm:$0xff]
  %v136 = vld [vmem:[%s1 + $0x2e8] sm:$0xff]
  %v137 = vld [vmem:[%s1 + $0x2f0] sm:$0xff]
  %v138 = vld [vmem:[%s1 + $0x2f8] sm:$0xff]
  %v139 = vld [vmem:[%s1 + $0x300] sm:$0xff]
  %v140 = vld [vmem:[%s1 + $0x308] sm:$0xff]
  %v141 = vld [vmem:[%s1 + $0x310] sm:$0xff]
  %v142 = vld [vmem:[%s1 + $0x318] sm:$0xff]
  %v143 = vld [vmem:[%s1 + $0x320] sm:$0xff]
  %v144 = vld [vmem:[%s1 + $0x328] sm:$0xff]
  %v145 = vld [vmem:[%s1 + $0x330] sm:$0xff]
  %v146 = vld [vmem:[%s1 + $0x338] sm:$0xff]
  %v147 = vld [vmem:[%s1 + $0x340] sm:$0xff]
  %v148 = vld [vmem:[%s1 + $0x348] sm:$0xff]
  %v149 = vld [vmem:[%s1 + $0x350] sm:$0xff]
  %v150 = vld [vmem:[%s1 + $0x358] sm:$0xff]
  %v151 = vld [vmem:[%s1 + $0x360] sm:$0xff]
  %v152 = vld [vmem:[%s1 + $0x368] sm:$0xff]
  %v153 = vld [vmem:[%s1 + $0x370] sm:$0xff]
  %v154 = vld [vmem:[%s1 + $0x378] sm:$0xff]
  %v155 = vld [vmem:[%s1 + $0x380] sm:$0xff]
  %v156 = vld [vmem:[%s1 + $0x388] sm:$0xff]
  %v157 = vld [vmem:[%s1 + $0x390] sm:$0xff]
  %v158 = vld [vmem:[%s1 + $0x398] sm:$0xff]
  %v159 = vld [vmem:[%s1 + $0x3a0] sm:$0xff]
  %v160 = vld [vmem:[%s1 + $0x3a8] sm:$0xff]
  %v161 = vld [vmem:[%s1 + $0x3b0] sm:$0xff]
  %v162 = vld [vmem:[%s1 + $0x3b8] sm:$0xff]
  %v163 = vld [vmem:[%s1 + $0x3c0] sm:$0xff]
  %v164 = vld [vmem:[%s1 + $0x3c8] sm:$0xff]
  %v165 = vld [vmem:[%s1 + $0x3d0] sm:$0xff]
  %v166 = vld [vmem:[%s1 + $0x3d8] sm:$0xff]
  %v167 = vld [vmem:[%s1 + $0x3e0] sm:$0xff]
  %v168 = vld [vmem:[%s1 + $0x3e8] sm:$0xff]
  %v169 = vld [vmem:[%s1 + $0x3f0] sm:$0xff]
  %v170 = vld [vmem:[%s1 + $0x3f8] sm:$0xff]
  %v171 = vld [vmem:[%s1 + $0x400] sm:$0xff]
  %v172 = vld [vmem:[%s1 + $0x408] sm:$0xff]
  %v173 = vld [vmem:[%s1 + $0x410] sm:$0xff]
  %v174 = vld [vmem:[%s1 + $0x418] sm:$0xff]
  %v175 = vld [vmem:[%s1 + $0x420] sm:$0xff]
  %v176 = vld [vmem:[%s1 + $0x428] sm:$0xff]
  %v177 = vld [vmem:[%s1 + $0x430] sm:$0xff]
  %v178 = vld [vmem:[%s1 + $0x438] sm:$0xff]
  %v179 = vld [vmem:[%s1 + $0x440] sm:$0xff]
  %v180 = vld [vmem:[%s1 + $0x448] sm:$0xff]
  %v181 = vld [vmem:[%s1 + $0x450] sm:$0xff]
  %v182 = vld [vmem:[%s1 + $0x458] sm:$0xff]
  %v183 = vld [vmem:[%s1 + $0x460] sm:$0xff]
  %v184 = vld [vmem:[%s1 + $0x468] sm:$0xff]
  %v185 = vld [vmem:[%s1 + $0x470] sm:$0xff]
  %v186 = vld [vmem:[%s1 + $0x478] sm:$0xff]
  %v187 = vld [vmem:[%s1 + $0x480] sm:$0xff]
  %v188 = vld [vmem:[%s1 + $0x488] sm:$0xff]
  %v189 = vld [vmem:[%s1 + $0x490] sm:$0xff]
  %v190 = vld [vmem:[%s1 + $0x498] sm:$0xff]
  %v191 = vld [vmem:[%s1 + $0x4a0] sm:$0xff]
  %v192 = vld [vmem:[%s1 + $0x4a8] sm:$0xff]
  %v193 = vld [vmem:[%s1 + $0x4b0] sm:$0xff]
  %v194 = vld [vmem:[%s1 + $0x4b8] sm:$0xff]
  %v195 = vld [vmem:[%s1 + $0x4c0] sm:$0xff]
  %v196 = vld [vmem:[%s1 + $0x4c8] sm:$0xff]
  %v197 = vld [vmem:[%s1 + $0x4d0] sm:$0xff]
  %v198 = vld [vmem:[%s1 + $0x4d8] sm:$0xff]
  %v199 = vld [vmem:[%s1 + $0x4e0] sm:$0xff]
  %v200 = vld [vmem:[%s1 + $0x4e8] sm:$0xff]
  %v201 = vld [vmem:[%s1 + $0x4f0] sm:$0xff]
  %v202 = vld [vmem:[%s1 + $0x4f8] sm:$0xff]
  %v203 = vld [vmem:[%s1 + $0x500] sm:$0xff]
  %v204 = vld [vmem:[%s1 + $0x508] sm:$0xff]
  %v205 = vld [vmem:[%s1 + $0x510] sm:$0xff]
  %v206 = vld [vmem:[%s1 + $0x518] sm:$0xff]
  %v207 = vld [vmem:[%s1 + $0x520] sm:$0xff]
  %v208 = vld [vmem:[%s1 + $0x528] sm:$0xff]
  %v209 = vld [vmem:[%s1 + $0x530] sm:$0xff]
  %v210 = vld [vmem:[%s1 + $0x538] sm:$0xff]
  %v211 = vld [vmem:[%s1 + $0x540] sm:$0xff]
  %v212 = vld [vmem:[%s1 + $0x548] sm:$0xff]
  %v213 = vld [vmem:[%s1 + $0x550] sm:$0xff]
  %v214 = vld [vmem:[%s1 + $0x558] sm:$0xff]
  %v215 = vld [vmem:[%s1 + $0x560] sm:$0xff]
  %v216 = vld [vmem:[%s1 + $0x568] sm:$0xff]
  %v217 = vld [vmem:[%s1 + $0x570] sm:$0xff]
  %v218 = vld [vmem:[%s1 + $0x578] sm:$0xff]
  %v219 = vld [vmem:[%s1 + $0x580] sm:$0xff]
  %v220 = vld [vmem:[%s1 + $0x588] sm:$0xff]
  %v221 = vld [vmem:[%s1 + $0x590] sm:$0xff]
  %v222 = vld [vmem:[%s1 + $0x598] sm:$0xff]
  %v223 = vld [vmem:[%s1 + $0x5a0] sm:$0xff]
  %v224 = vld [vmem:[%s1 + $0x5a8] sm:$0xff]
  %v225 = vld [vmem:[%s1 + $0x5b0] sm:$0xff]
  %v226 = vld [vmem:[%s1 + $0x5b8] sm:$0xff]
  %v227 = vld [vmem:[%s1 + $0x5c0] sm:$0xff]
  %v228 = vld [vmem:[%s1 + $0x5c8] sm:$0xff]
  %v229 = vld [vmem:[%s1 + $0x5d0] sm:$0xff]
  %v230 = vld [vmem:[%s1 + $0x5d8] sm:$0xff]
  %v231 = vld [vmem:[%s1 + $0x5e0] sm:$0xff]
  %v232 = vld [vmem:[%s1 + $0x5e8] sm:$0xff]
  %v233 = vld [vmem:[%s1 + $0x5f0] sm:$0xff]
  %v234 = vld [vmem:[%s1 + $0x5f8] sm:$0xff]
  %v235 = vld [vmem:[%s1 + $0x600] sm:$0xff]
  %v236 = vld [vmem:[%s1 + $0x608] sm:$0xff]
  %v237 = vld [vmem:[%s1 + $0x610] sm:$0xff]
  %v238 = vld [vmem:[%s1 + $0x618] sm:$0xff]
  %v239 = vld [vmem:[%s1 + $0x620] sm:$0xff]
  %v240 = vld [vmem:[%s1 + $0x628] sm:$0xff]
  %v241 = vld [vmem:[%s1 + $0x630] sm:$0xff]
  %v242 = vld [vmem:[%s1 + $0x638] sm:$0xff]
  %v243 = vld [vmem:[%s1 + $0x640] sm:$0xff]
  %v244 = vld [vmem:[%s1 + $0x648] sm:$0xff]
  %v245 = vld [vmem:[%s1 + $0x650] sm:$0xff]
  %v246 = vld [vmem:[%s1 + $0x658] sm:$0xff]
  %v247 = vld [vmem:[%s1 + $0x660] sm:$0xff]
  %v248 = vld [vmem:[%s1 + $0x668] sm:$0xff]
  %v249 = vld [vmem:[%s1 + $0x670] sm:$0xff]
  %v250 = vld [vmem:[%s1 + $0x678] sm:$0xff]
  %v251 = vld [vmem:[%s1 + $0x680] sm:$0xff]
  %v252 = vld [vmem:[%s1 + $0x688] sm:$0xff]
  %v253 = vld [vmem:[%s1 + $0x690] sm:$0xff]
  %v254 = vld [vmem:[%s1 + $0x698] sm:$0xff]
  %v255 = vld [vmem:[%s1 + $0x6a0] sm:$0xff]
  %v256 = vld [vmem:[%s1 + $0x6a8] sm:$0xff]
  %v257 = vld [vmem:[%s1 + $0x6b0] sm:$0xff]
  %v258 = vld [vmem:[%s1 + $0x6b8] sm:$0xff]
  %v259 = vld [vmem:[%s1 + $0x6c0] sm:$0xff]
  %v260 = vld [vmem:[%s1 + $0x6c8] sm:$0xff]
  %v261 = vld [vmem:[%s1 + $0x6d0] sm:$0xff]
  %v262 = vld [vmem:[%s1 + $0x6d8] sm:$0xff]
  %v263 = vld [vmem:[%s1 + $0x6e0] sm:$0xff]
  %v264 = vld [vmem:[%s1 + $0x6e8] sm:$0xff]
  %v265 = vld [vmem:[%s1 + $0x6f0] sm:$0xff]
  %v266 = vld [vmem:[%s1 + $0x6f8] sm:$0xff]
  %v267 = vld [vmem:[%s1 + $0x700] sm:$0xff]
  %v268 = vld [vmem:[%s1 + $0x708] sm:$0xff]
  %v269 = vld [vmem:[%s1 + $0x710] sm:$0xff]
  %v270 = vld [vmem:[%s1 + $0x718] sm:$0xff]
  %v271 = vld [vmem:[%s1 + $0x720] sm:$0xff]
  %v272 = vld [vmem:[%s1 + $0x728] sm:$0xff]
  %v273 = vld [vmem:[%s1 + $0x730] sm:$0xff]
  %v274 = vld [vmem:[%s1 + $0x738] sm:$0xff]
  %v275 = vld [vmem:[%s1 + $0x740] sm:$0xff]
  %v276 = vld [vmem:[%s1 + $0x748] sm:$0xff]
  %v277 = vld [vmem:[%s1 + $0x750] sm:$0xff]
  %v278 = vld [vmem:[%s1 + $0x758] sm:$0xff]
  %v279 = vld [vmem:[%s1 + $0x760] sm:$0xff]
  %v280 = vld [vmem:[%s1 + $0x768] sm:$0xff]
  %v281 = vld [vmem:[%s1 + $0x770] sm:$0xff]
  %v282 = vld [vmem:[%s1 + $0x778] sm:$0xff]
  %v283 = vld [vmem:[%s1 + $0x780] sm:$0xff]
  %v284 = vld [vmem:[%s1 + $0x788] sm:$0xff]
  %v285 = vld [vmem:[%s2] sm:$0xf]
  %v287 = vlaneseq
  %v288 = vshrl.u32 %v287, 7
  %v289 = vsub.s32 0, %v288
  %v290 = vrot.slane %v285, %v289
  %v291 = vlaneseq
  %v292 = vshrl.u32 %v291, 7
  %v293 = vsub.s32 1, %v292
  %v294 = vrot.slane %v285, %v293
  %v295 = vlaneseq
  %v296 = vshrl.u32 %v295, 7
  %v297 = vsub.s32 2, %v296
  %v298 = vrot.slane %v285, %v297
  %v299 = vlaneseq
  %v300 = vshrl.u32 %v299, 7
  %v301 = vsub.s32 3, %v300
  %v302 = vrot.slane %v285, %v301
  %v549 = vunpack.c.l.b16 %v43
  %v550 = vunpack.c.h.b16 %v43
  %v551 = vunpack.c.l.b16 %v44
  %v552 = vunpack.c.h.b16 %v44
  %v553 = vunpack.c.l.b16 %v45
  %v554 = vunpack.c.h.b16 %v45
  %v555 = vunpack.c.l.b16 %v46
  %v556 = vunpack.c.h.b16 %v46
  %v557 = vunpack.c.l.b16 %v47
  %v558 = vunpack.c.h.b16 %v47
  %v559 = vunpack.c.l.b16 %v48
  %v560 = vunpack.c.h.b16 %v48
  %v561 = vunpack.c.l.b16 %v49
  %v562 = vunpack.c.h.b16 %v49
  %v563 = vunpack.c.l.b16 %v50
  %v564 = vunpack.c.h.b16 %v50
  %v565 = vunpack.c.l.b16 %v51
  %v566 = vunpack.c.h.b16 %v51
  %v567 = vunpack.c.l.b16 %v52
  %v568 = vunpack.c.h.b16 %v52
  %v569 = vunpack.c.l.b16 %v53
  %v570 = vunpack.c.h.b16 %v53
  %v571 = vunpack.c.l.b16 %v54
  %v572 = vunpack.c.h.b16 %v54
  %v573 = vunpack.c.l.b16 %v55
  %v574 = vunpack.c.h.b16 %v55
  %v575 = vunpack.c.l.b16 %v56
  %v576 = vunpack.c.h.b16 %v56
  %v577 = vunpack.c.l.b16 %v57
  %v578 = vunpack.c.h.b16 %v57
  %v579 = vunpack.c.l.b16 %v58
  %v580 = vunpack.c.h.b16 %v58
  %v581 = vunpack.c.l.b16 %v59
  %v582 = vunpack.c.h.b16 %v59
  %v583 = vunpack.c.l.b16 %v60
  %v584 = vunpack.c.h.b16 %v60
  %v585 = vunpack.c.l.b16 %v61
  %v586 = vunpack.c.h.b16 %v61
  %v587 = vunpack.c.l.b16 %v62
  %v588 = vunpack.c.h.b16 %v62
  %v589 = vunpack.c.l.b16 %v63
  %v590 = vunpack.c.h.b16 %v63
  %v591 = vunpack.c.l.b16 %v64
  %v592 = vunpack.c.h.b16 %v64
  %v593 = vunpack.c.l.b16 %v65
  %v594 = vunpack.c.h.b16 %v65
  %v595 = vunpack.c.l.b16 %v66
  %v596 = vunpack.c.h.b16 %v66
  %v597 = vunpack.c.l.b16 %v67
  %v598 = vunpack.c.h.b16 %v67
  %v599 = vunpack.c.l.b16 %v68
  %v600 = vunpack.c.h.b16 %v68
  %v601 = vunpack.c.l.b16 %v69
  %v602 = vunpack.c.h.b16 %v69
  %v603 = vunpack.c.l.b16 %v70
  %v604 = vunpack.c.h.b16 %v70
  %v605 = vunpack.c.l.b16 %v71
  %v606 = vunpack.c.h.b16 %v71
  %v607 = vunpack.c.l.b16 %v72
  %v608 = vunpack.c.h.b16 %v72
  %v609 = vunpack.c.l.b16 %v73
  %v610 = vunpack.c.h.b16 %v73
  %v611 = vunpack.c.l.b16 %v74
  %v612 = vunpack.c.h.b16 %v74
  %v613 = vunpack.c.l.b16 %v75
  %v614 = vunpack.c.h.b16 %v75
  %v615 = vunpack.c.l.b16 %v76
  %v616 = vunpack.c.h.b16 %v76
  %v617 = vunpack.c.l.b16 %v77
  %v618 = vunpack.c.h.b16 %v77
  %v619 = vunpack.c.l.b16 %v78
  %v620 = vunpack.c.h.b16 %v78
  %v621 = vunpack.c.l.b16 %v79
  %v622 = vunpack.c.h.b16 %v79
  %v623 = vunpack.c.l.b16 %v80
  %v624 = vunpack.c.h.b16 %v80
  %v625 = vunpack.c.l.b16 %v81
  %v626 = vunpack.c.h.b16 %v81
  %v627 = vunpack.c.l.b16 %v82
  %v628 = vunpack.c.h.b16 %v82
  %v629 = vunpack.c.l.b16 %v83
  %v630 = vunpack.c.h.b16 %v83
  %v631 = vunpack.c.l.b16 %v84
  %v632 = vunpack.c.h.b16 %v84
  %v633 = vunpack.c.l.b16 %v85
  %v634 = vunpack.c.h.b16 %v85
  %v635 = vunpack.c.l.b16 %v86
  %v636 = vunpack.c.h.b16 %v86
  %v637 = vunpack.c.l.b16 %v87
  %v638 = vunpack.c.h.b16 %v87
  %v639 = vunpack.c.l.b16 %v88
  %v640 = vunpack.c.h.b16 %v88
  %v641 = vunpack.c.l.b16 %v89
  %v642 = vunpack.c.h.b16 %v89
  %v643 = vunpack.c.l.b16 %v90
  %v644 = vunpack.c.h.b16 %v90
  %v645 = vunpack.c.l.b16 %v91
  %v646 = vunpack.c.h.b16 %v91
  %v647 = vunpack.c.l.b16 %v92
  %v648 = vunpack.c.h.b16 %v92
  %v649 = vunpack.c.l.b16 %v93
  %v650 = vunpack.c.h.b16 %v93
  %v651 = vunpack.c.l.b16 %v94
  %v652 = vunpack.c.h.b16 %v94
  %v653 = vunpack.c.l.b16 %v95
  %v654 = vunpack.c.h.b16 %v95
  %v655 = vunpack.c.l.b16 %v96
  %v656 = vunpack.c.h.b16 %v96
  %v657 = vunpack.c.l.b16 %v97
  %v658 = vunpack.c.h.b16 %v97
  %v659 = vunpack.c.l.b16 %v98
  %v660 = vunpack.c.h.b16 %v98
  %v661 = vunpack.c.l.b16 %v99
  %v662 = vunpack.c.h.b16 %v99
  %v663 = vunpack.c.l.b16 %v100
  %v664 = vunpack.c.h.b16 %v100
  %v665 = vunpack.c.l.b16 %v101
  %v666 = vunpack.c.h.b16 %v101
  %v667 = vunpack.c.l.b16 %v102
  %v668 = vunpack.c.h.b16 %v102
  %v669 = vunpack.c.l.b16 %v103
  %v670 = vunpack.c.h.b16 %v103
  %v671 = vunpack.c.l.b16 %v104
  %v672 = vunpack.c.h.b16 %v104
  %v673 = vunpack.c.l.b16 %v105
  %v674 = vunpack.c.h.b16 %v105
  %v675 = vunpack.c.l.b16 %v106
  %v676 = vunpack.c.h.b16 %v106
  %v677 = vunpack.c.l.b16 %v107
  %v678 = vunpack.c.h.b16 %v107
  %v679 = vunpack.c.l.b16 %v108
  %v680 = vunpack.c.h.b16 %v108
  %v681 = vunpack.c.l.b16 %v109
  %v682 = vunpack.c.h.b16 %v109
  %v683 = vunpack.c.l.b16 %v110
  %v684 = vunpack.c.h.b16 %v110
  %v685 = vunpack.c.l.b16 %v111
  %v686 = vunpack.c.h.b16 %v111
  %v687 = vunpack.c.l.b16 %v112
  %v688 = vunpack.c.h.b16 %v112
  %v689 = vunpack.c.l.b16 %v113
  %v690 = vunpack.c.h.b16 %v113
  %v691 = vunpack.c.l.b16 %v114
  %v692 = vunpack.c.h.b16 %v114
  %v693 = vunpack.c.l.b16 %v115
  %v694 = vunpack.c.h.b16 %v115
  %v695 = vunpack.c.l.b16 %v116
  %v696 = vunpack.c.h.b16 %v116
  %v697 = vunpack.c.l.b16 %v117
  %v698 = vunpack.c.h.b16 %v117
  %v699 = vunpack.c.l.b16 %v118
  %v700 = vunpack.c.h.b16 %v118
  %v701 = vunpack.c.l.b16 %v119
  %v702 = vunpack.c.h.b16 %v119
  %v703 = vunpack.c.l.b16 %v120
  %v704 = vunpack.c.h.b16 %v120
  %v705 = vunpack.c.l.b16 %v121
  %v706 = vunpack.c.h.b16 %v121
  %v707 = vunpack.c.l.b16 %v122
  %v708 = vunpack.c.h.b16 %v122
  %v709 = vunpack.c.l.b16 %v123
  %v710 = vunpack.c.h.b16 %v123
  %v711 = vunpack.c.l.b16 %v124
  %v712 = vunpack.c.h.b16 %v124
  %v713 = vunpack.c.l.b16 %v125
  %v714 = vunpack.c.h.b16 %v125
  %v715 = vunpack.c.l.b16 %v126
  %v716 = vunpack.c.h.b16 %v126
  %v717 = vunpack.c.l.b16 %v127
  %v718 = vunpack.c.h.b16 %v127
  %v719 = vunpack.c.l.b16 %v128
  %v720 = vunpack.c.h.b16 %v128
  %v721 = vunpack.c.l.b16 %v129
  %v722 = vunpack.c.h.b16 %v129
  %v723 = vunpack.c.l.b16 %v130
  %v724 = vunpack.c.h.b16 %v130
  %v725 = vunpack.c.l.b16 %v131
  %v726 = vunpack.c.h.b16 %v131
  %v727 = vunpack.c.l.b16 %v132
  %v728 = vunpack.c.h.b16 %v132
  %v729 = vunpack.c.l.b16 %v133
  %v730 = vunpack.c.h.b16 %v133
  %v731 = vunpack.c.l.b16 %v134
  %v732 = vunpack.c.h.b16 %v134
  %v733 = vunpack.c.l.b16 %v135
  %v734 = vunpack.c.h.b16 %v135
  %v735 = vunpack.c.l.b16 %v136
  %v736 = vunpack.c.h.b16 %v136
  %v737 = vunpack.c.l.b16 %v137
  %v738 = vunpack.c.h.b16 %v137
  %v739 = vunpack.c.l.b16 %v138
  %v740 = vunpack.c.h.b16 %v138
  %v741 = vunpack.c.l.b16 %v139
  %v742 = vunpack.c.h.b16 %v139
  %v743 = vunpack.c.l.b16 %v140
  %v744 = vunpack.c.h.b16 %v140
  %v745 = vunpack.c.l.b16 %v141
  %v746 = vunpack.c.h.b16 %v141
  %v747 = vunpack.c.l.b16 %v142
  %v748 = vunpack.c.h.b16 %v142
  %v749 = vunpack.c.l.b16 %v143
  %v750 = vunpack.c.h.b16 %v143
  %v751 = vunpack.c.l.b16 %v144
  %v752 = vunpack.c.h.b16 %v144
  %v753 = vunpack.c.l.b16 %v145
  %v754 = vunpack.c.h.b16 %v145
  %v755 = vunpack.c.l.b16 %v146
  %v756 = vunpack.c.h.b16 %v146
  %v757 = vunpack.c.l.b16 %v147
  %v758 = vunpack.c.h.b16 %v147
  %v759 = vunpack.c.l.b16 %v148
  %v760 = vunpack.c.h.b16 %v148
  %v761 = vunpack.c.l.b16 %v149
  %v762 = vunpack.c.h.b16 %v149
  %v763 = vunpack.c.l.b16 %v150
  %v764 = vunpack.c.h.b16 %v150
  %v765 = vunpack.c.l.b16 %v151
  %v766 = vunpack.c.h.b16 %v151
  %v767 = vunpack.c.l.b16 %v152
  %v768 = vunpack.c.h.b16 %v152
  %v769 = vunpack.c.l.b16 %v153
  %v770 = vunpack.c.h.b16 %v153
  %v771 = vunpack.c.l.b16 %v154
  %v772 = vunpack.c.h.b16 %v154
  %v773 = vunpack.c.l.b16 %v155
  %v774 = vunpack.c.h.b16 %v155
  %v775 = vunpack.c.l.b16 %v156
  %v776 = vunpack.c.h.b16 %v156
  %v777 = vunpack.c.l.b16 %v157
  %v778 = vunpack.c.h.b16 %v157
  %v779 = vunpack.c.l.b16 %v158
  %v780 = vunpack.c.h.b16 %v158
  %v781 = vunpack.c.l.b16 %v159
  %v782 = vunpack.c.h.b16 %v159
  %v783 = vunpack.c.l.b16 %v160
  %v784 = vunpack.c.h.b16 %v160
  %v785 = vunpack.c.l.b16 %v161
  %v786 = vunpack.c.h.b16 %v161
  %v787 = vunpack.c.l.b16 %v162
  %v788 = vunpack.c.h.b16 %v162
  %v789 = vunpack.c.l.b16 %v163
  %v790 = vunpack.c.h.b16 %v163
  %v791 = vunpack.c.l.b16 %v164
  %v792 = vunpack.c.h.b16 %v164
  %v793 = vunpack.c.l.b16 %v165
  %v794 = vunpack.c.h.b16 %v165
  %v795 = vunpack.c.l.b16 %v166
  %v796 = vunpack.c.h.b16 %v166
  %v797 = vunpack.c.l.b16 %v167
  %v798 = vunpack.c.h.b16 %v167
  %v799 = vunpack.c.l.b16 %v168
  %v800 = vunpack.c.h.b16 %v168
  %v801 = vunpack.c.l.b16 %v169
  %v802 = vunpack.c.h.b16 %v169
  %v803 = vunpack.c.l.b16 %v170
  %v804 = vunpack.c.h.b16 %v170
  %v805 = vunpack.c.l.b16 %v171
  %v806 = vunpack.c.h.b16 %v171
  %v807 = vunpack.c.l.b16 %v172
  %v808 = vunpack.c.h.b16 %v172
  %v809 = vunpack.c.l.b16 %v173
  %v810 = vunpack.c.h.b16 %v173
  %v811 = vunpack.c.l.b16 %v174
  %v812 = vunpack.c.h.b16 %v174
  %v813 = vunpack.c.l.b16 %v175
  %v814 = vunpack.c.h.b16 %v175
  %v815 = vunpack.c.l.b16 %v176
  %v816 = vunpack.c.h.b16 %v176
  %v817 = vunpack.c.l.b16 %v177
  %v818 = vunpack.c.h.b16 %v177
  %v819 = vunpack.c.l.b16 %v178
  %v820 = vunpack.c.h.b16 %v178
  %v821 = vunpack.c.l.b16 %v179
  %v822 = vunpack.c.h.b16 %v179
  %v823 = vunpack.c.l.b16 %v180
  %v824 = vunpack.c.h.b16 %v180
  %v825 = vunpack.c.l.b16 %v181
  %v826 = vunpack.c.h.b16 %v181
  %v827 = vunpack.c.l.b16 %v182
  %v828 = vunpack.c.h.b16 %v182
  %v829 = vunpack.c.l.b16 %v183
  %v830 = vunpack.c.h.b16 %v183
  %v831 = vunpack.c.l.b16 %v184
  %v832 = vunpack.c.h.b16 %v184
  %v833 = vunpack.c.l.b16 %v185
  %v834 = vunpack.c.h.b16 %v185
  %v835 = vunpack.c.l.b16 %v186
  %v836 = vunpack.c.h.b16 %v186
  %v837 = vunpack.c.l.b16 %v187
  %v838 = vunpack.c.h.b16 %v187
  %v839 = vunpack.c.l.b16 %v188
  %v840 = vunpack.c.h.b16 %v188
  %v841 = vunpack.c.l.b16 %v189
  %v842 = vunpack.c.h.b16 %v189
  %v843 = vunpack.c.l.b16 %v190
  %v844 = vunpack.c.h.b16 %v190
  %v845 = vunpack.c.l.b16 %v191
  %v846 = vunpack.c.h.b16 %v191
  %v847 = vunpack.c.l.b16 %v192
  %v848 = vunpack.c.h.b16 %v192
  %v849 = vunpack.c.l.b16 %v193
  %v850 = vunpack.c.h.b16 %v193
  %v851 = vunpack.c.l.b16 %v194
  %v852 = vunpack.c.h.b16 %v194
  %v853 = vunpack.c.l.b16 %v195
  %v854 = vunpack.c.h.b16 %v195
  %v855 = vunpack.c.l.b16 %v196
  %v856 = vunpack.c.h.b16 %v196
  %v857 = vunpack.c.l.b16 %v197
  %v858 = vunpack.c.h.b16 %v197
  %v859 = vunpack.c.l.b16 %v198
  %v860 = vunpack.c.h.b16 %v198
  %v861 = vunpack.c.l.b16 %v199
  %v862 = vunpack.c.h.b16 %v199
  %v863 = vunpack.c.l.b16 %v200
  %v864 = vunpack.c.h.b16 %v200
  %v865 = vunpack.c.l.b16 %v201
  %v866 = vunpack.c.h.b16 %v201
  %v867 = vunpack.c.l.b16 %v202
  %v868 = vunpack.c.h.b16 %v202
  %v869 = vunpack.c.l.b16 %v203
  %v870 = vunpack.c.h.b16 %v203
  %v871 = vunpack.c.l.b16 %v204
  %v872 = vunpack.c.h.b16 %v204
  %v873 = vunpack.c.l.b16 %v205
  %v874 = vunpack.c.h.b16 %v205
  %v875 = vunpack.c.l.b16 %v206
  %v876 = vunpack.c.h.b16 %v206
  %v877 = vunpack.c.l.b16 %v207
  %v878 = vunpack.c.h.b16 %v207
  %v879 = vunpack.c.l.b16 %v208
  %v880 = vunpack.c.h.b16 %v208
  %v881 = vunpack.c.l.b16 %v209
  %v882 = vunpack.c.h.b16 %v209
  %v883 = vunpack.c.l.b16 %v210
  %v884 = vunpack.c.h.b16 %v210
  %v885 = vunpack.c.l.b16 %v211
  %v886 = vunpack.c.h.b16 %v211
  %v887 = vunpack.c.l.b16 %v212
  %v888 = vunpack.c.h.b16 %v212
  %v889 = vunpack.c.l.b16 %v213
  %v890 = vunpack.c.h.b16 %v213
  %v891 = vunpack.c.l.b16 %v214
  %v892 = vunpack.c.h.b16 %v214
  %v893 = vunpack.c.l.b16 %v215
  %v894 = vunpack.c.h.b16 %v215
  %v895 = vunpack.c.l.b16 %v216
  %v896 = vunpack.c.h.b16 %v216
  %v897 = vunpack.c.l.b16 %v217
  %v898 = vunpack.c.h.b16 %v217
  %v899 = vunpack.c.l.b16 %v218
  %v900 = vunpack.c.h.b16 %v218
  %v901 = vunpack.c.l.b16 %v219
  %v902 = vunpack.c.h.b16 %v219
  %v903 = vunpack.c.l.b16 %v220
  %v904 = vunpack.c.h.b16 %v220
  %v905 = vunpack.c.l.b16 %v221
  %v906 = vunpack.c.h.b16 %v221
  %v907 = vunpack.c.l.b16 %v222
  %v908 = vunpack.c.h.b16 %v222
  %v909 = vunpack.c.l.b16 %v223
  %v910 = vunpack.c.h.b16 %v223
  %v911 = vunpack.c.l.b16 %v224
  %v912 = vunpack.c.h.b16 %v224
  %v913 = vunpack.c.l.b16 %v225
  %v914 = vunpack.c.h.b16 %v225
  %v915 = vunpack.c.l.b16 %v226
  %v916 = vunpack.c.h.b16 %v226
  %v917 = vunpack.c.l.b16 %v227
  %v918 = vunpack.c.h.b16 %v227
  %v919 = vunpack.c.l.b16 %v228
  %v920 = vunpack.c.h.b16 %v228
  %v921 = vunpack.c.l.b16 %v229
  %v922 = vunpack.c.h.b16 %v229
  %v923 = vunpack.c.l.b16 %v230
  %v924 = vunpack.c.h.b16 %v230
  %v925 = vunpack.c.l.b16 %v231
  %v926 = vunpack.c.h.b16 %v231
  %v927 = vunpack.c.l.b16 %v232
  %v928 = vunpack.c.h.b16 %v232
  %v929 = vunpack.c.l.b16 %v233
  %v930 = vunpack.c.h.b16 %v233
  %v931 = vunpack.c.l.b16 %v234
  %v932 = vunpack.c.h.b16 %v234
  %v933 = vunpack.c.l.b16 %v235
  %v934 = vunpack.c.h.b16 %v235
  %v935 = vunpack.c.l.b16 %v236
  %v936 = vunpack.c.h.b16 %v236
  %v937 = vunpack.c.l.b16 %v237
  %v938 = vunpack.c.h.b16 %v237
  %v939 = vunpack.c.l.b16 %v238
  %v940 = vunpack.c.h.b16 %v238
  %v941 = vunpack.c.l.b16 %v239
  %v942 = vunpack.c.h.b16 %v239
  %v943 = vunpack.c.l.b16 %v240
  %v944 = vunpack.c.h.b16 %v240
  %v945 = vunpack.c.l.b16 %v241
  %v946 = vunpack.c.h.b16 %v241
  %v947 = vunpack.c.l.b16 %v242
  %v948 = vunpack.c.h.b16 %v242
  %v949 = vunpack.c.l.b16 %v243
  %v950 = vunpack.c.h.b16 %v243
  %v951 = vunpack.c.l.b16 %v244
  %v952 = vunpack.c.h.b16 %v244
  %v953 = vunpack.c.l.b16 %v245
  %v954 = vunpack.c.h.b16 %v245
  %v955 = vunpack.c.l.b16 %v246
  %v956 = vunpack.c.h.b16 %v246
  %v957 = vunpack.c.l.b16 %v247
  %v958 = vunpack.c.h.b16 %v247
  %v959 = vunpack.c.l.b16 %v248
  %v960 = vunpack.c.h.b16 %v248
  %v961 = vunpack.c.l.b16 %v249
  %v962 = vunpack.c.h.b16 %v249
  %v963 = vunpack.c.l.b16 %v250
  %v964 = vunpack.c.h.b16 %v250
  %v965 = vunpack.c.l.b16 %v251
  %v966 = vunpack.c.h.b16 %v251
  %v967 = vunpack.c.l.b16 %v252
  %v968 = vunpack.c.h.b16 %v252
  %v969 = vunpack.c.l.b16 %v253
  %v970 = vunpack.c.h.b16 %v253
  %v971 = vunpack.c.l.b16 %v254
  %v972 = vunpack.c.h.b16 %v254
  %v973 = vunpack.c.l.b16 %v255
  %v974 = vunpack.c.h.b16 %v255
  %v975 = vunpack.c.l.b16 %v256
  %v976 = vunpack.c.h.b16 %v256
  %v977 = vunpack.c.l.b16 %v257
  %v978 = vunpack.c.h.b16 %v257
  %v979 = vunpack.c.l.b16 %v258
  %v980 = vunpack.c.h.b16 %v258
  %v981 = vunpack.c.l.b16 %v259
  %v982 = vunpack.c.h.b16 %v259
  %v983 = vunpack.c.l.b16 %v260
  %v984 = vunpack.c.h.b16 %v260
  %v985 = vunpack.c.l.b16 %v261
  %v986 = vunpack.c.h.b16 %v261
  %v987 = vunpack.c.l.b16 %v262
  %v988 = vunpack.c.h.b16 %v262
  %v989 = vunpack.c.l.b16 %v263
  %v990 = vunpack.c.h.b16 %v263
  %v991 = vunpack.c.l.b16 %v264
  %v992 = vunpack.c.h.b16 %v264
  %v993 = vunpack.c.l.b16 %v265
  %v994 = vunpack.c.h.b16 %v265
  %v995 = vunpack.c.l.b16 %v266
  %v996 = vunpack.c.h.b16 %v266
  %v997 = vunpack.c.l.b16 %v267
  %v998 = vunpack.c.h.b16 %v267
  %v999 = vunpack.c.l.b16 %v268
  %v1000 = vunpack.c.h.b16 %v268
  %v1001 = vunpack.c.l.b16 %v269
  %v1002 = vunpack.c.h.b16 %v269
  %v1003 = vunpack.c.l.b16 %v270
  %v1004 = vunpack.c.h.b16 %v270
  %v1005 = vunpack.c.l.b16 %v271
  %v1006 = vunpack.c.h.b16 %v271
  %v1007 = vunpack.c.l.b16 %v272
  %v1008 = vunpack.c.h.b16 %v272
  %v1009 = vunpack.c.l.b16 %v273
  %v1010 = vunpack.c.h.b16 %v273
  %v1011 = vunpack.c.l.b16 %v274
  %v1012 = vunpack.c.h.b16 %v274
  %v1013 = vunpack.c.l.b16 %v275
  %v1014 = vunpack.c.h.b16 %v275
  %v1015 = vunpack.c.l.b16 %v276
  %v1016 = vunpack.c.h.b16 %v276
  %v1017 = vunpack.c.l.b16 %v277
  %v1018 = vunpack.c.h.b16 %v277
  %v1019 = vunpack.c.l.b16 %v278
  %v1020 = vunpack.c.h.b16 %v278
  %v1021 = vunpack.c.l.b16 %v279
  %v1022 = vunpack.c.h.b16 %v279
  %v1023 = vunpack.c.l.b16 %v280
  %v1024 = vunpack.c.h.b16 %v280
  %v1025 = vunpack.c.l.b16 %v281
  %v1026 = vunpack.c.h.b16 %v281
  %v1027 = vunpack.c.l.b16 %v282
  %v1028 = vunpack.c.h.b16 %v282
  %v1029 = vunpack.c.l.b16 %v283
  %v1030 = vunpack.c.h.b16 %v283
  %v1031 = vunpack.c.l.b16 %v284
  %v1032 = vunpack.c.h.b16 %v284
  %v1033 = vpack.c.b16 %v553, %v549
  %v1034 = vpack.c.b16 %v554, %v550
  %v1035 = vpack.c.b16 %v555, %v551
  %v1036 = vpack.c.b16 %v556, %v552
  %v1037 = vpack.c.b16 %v561, %v557
  %v1038 = vpack.c.b16 %v562, %v558
  %v1039 = vpack.c.b16 %v563, %v559
  %v1040 = vpack.c.b16 %v564, %v560
  %v1041 = vpack.c.b16 %v569, %v565
  %v1042 = vpack.c.b16 %v570, %v566
  %v1043 = vpack.c.b16 %v571, %v567
  %v1044 = vpack.c.b16 %v572, %v568
  %v1045 = vpack.c.b16 %v577, %v573
  %v1046 = vpack.c.b16 %v578, %v574
  %v1047 = vpack.c.b16 %v579, %v575
  %v1048 = vpack.c.b16 %v580, %v576
  %v1049 = vpack.c.b16 %v585, %v581
  %v1050 = vpack.c.b16 %v586, %v582
  %v1051 = vpack.c.b16 %v587, %v583
  %v1052 = vpack.c.b16 %v588, %v584
  %v1053 = vpack.c.b16 %v593, %v589
  %v1054 = vpack.c.b16 %v594, %v590
  %v1055 = vpack.c.b16 %v595, %v591
  %v1056 = vpack.c.b16 %v596, %v592
  %v1057 = vpack.c.b16 %v601, %v597
  %v1058 = vpack.c.b16 %v602, %v598
  %v1059 = vpack.c.b16 %v603, %v599
  %v1060 = vpack.c.b16 %v604, %v600
  %v1061 = vpack.c.b16 %v609, %v605
  %v1062 = vpack.c.b16 %v610, %v606
  %v1063 = vpack.c.b16 %v611, %v607
  %v1064 = vpack.c.b16 %v612, %v608
  %v1065 = vpack.c.b16 %v617, %v613
  %v1066 = vpack.c.b16 %v618, %v614
  %v1067 = vpack.c.b16 %v619, %v615
  %v1068 = vpack.c.b16 %v620, %v616
  %v1069 = vpack.c.b16 %v625, %v621
  %v1070 = vpack.c.b16 %v626, %v622
  %v1071 = vpack.c.b16 %v627, %v623
  %v1072 = vpack.c.b16 %v628, %v624
  %v1073 = vpack.c.b16 %v633, %v629
  %v1074 = vpack.c.b16 %v634, %v630
  %v1075 = vpack.c.b16 %v635, %v631
  %v1076 = vpack.c.b16 %v636, %v632
  %v1077 = vpack.c.b16 %v641, %v637
  %v1078 = vpack.c.b16 %v642, %v638
  %v1079 = vpack.c.b16 %v643, %v639
  %v1080 = vpack.c.b16 %v644, %v640
  %v1081 = vpack.c.b16 %v649, %v645
  %v1082 = vpack.c.b16 %v650, %v646
  %v1083 = vpack.c.b16 %v651, %v647
  %v1084 = vpack.c.b16 %v652, %v648
  %v1085 = vpack.c.b16 %v657, %v653
  %v1086 = vpack.c.b16 %v658, %v654
  %v1087 = vpack.c.b16 %v659, %v655
  %v1088 = vpack.c.b16 %v660, %v656
  %v1089 = vpack.c.b16 %v665, %v661
  %v1090 = vpack.c.b16 %v666, %v662
  %v1091 = vpack.c.b16 %v667, %v663
  %v1092 = vpack.c.b16 %v668, %v664
  %v1093 = vpack.c.b16 %v673, %v669
  %v1094 = vpack.c.b16 %v674, %v670
  %v1095 = vpack.c.b16 %v675, %v671
  %v1096 = vpack.c.b16 %v676, %v672
  %v1097 = vpack.c.b16 %v681, %v677
  %v1098 = vpack.c.b16 %v682, %v678
  %v1099 = vpack.c.b16 %v683, %v679
  %v1100 = vpack.c.b16 %v684, %v680
  %v1101 = vpack.c.b16 %v689, %v685
  %v1102 = vpack.c.b16 %v690, %v686
  %v1103 = vpack.c.b16 %v691, %v687
  %v1104 = vpack.c.b16 %v692, %v688
  %v1105 = vpack.c.b16 %v697, %v693
  %v1106 = vpack.c.b16 %v698, %v694
  %v1107 = vpack.c.b16 %v699, %v695
  %v1108 = vpack.c.b16 %v700, %v696
  %v1109 = vpack.c.b16 %v705, %v701
  %v1110 = vpack.c.b16 %v706, %v702
  %v1111 = vpack.c.b16 %v707, %v703
  %v1112 = vpack.c.b16 %v708, %v704
  %v1113 = vpack.c.b16 %v713, %v709
  %v1114 = vpack.c.b16 %v714, %v710
  %v1115 = vpack.c.b16 %v715, %v711
  %v1116 = vpack.c.b16 %v716, %v712
  %v1117 = vpack.c.b16 %v721, %v717
  %v1118 = vpack.c.b16 %v722, %v718
  %v1119 = vpack.c.b16 %v723, %v719
  %v1120 = vpack.c.b16 %v724, %v720
  %v1121 = vpack.c.b16 %v729, %v725
  %v1122 = vpack.c.b16 %v730, %v726
  %v1123 = vpack.c.b16 %v731, %v727
  %v1124 = vpack.c.b16 %v732, %v728
  %v1125 = vpack.c.b16 %v737, %v733
  %v1126 = vpack.c.b16 %v738, %v734
  %v1127 = vpack.c.b16 %v739, %v735
  %v1128 = vpack.c.b16 %v740, %v736
  %v1129 = vpack.c.b16 %v745, %v741
  %v1130 = vpack.c.b16 %v746, %v742
  %v1131 = vpack.c.b16 %v747, %v743
  %v1132 = vpack.c.b16 %v748, %v744
  %v1133 = vpack.c.b16 %v753, %v749
  %v1134 = vpack.c.b16 %v754, %v750
  %v1135 = vpack.c.b16 %v755, %v751
  %v1136 = vpack.c.b16 %v756, %v752
  %v1137 = vpack.c.b16 %v761, %v757
  %v1138 = vpack.c.b16 %v762, %v758
  %v1139 = vpack.c.b16 %v763, %v759
  %v1140 = vpack.c.b16 %v764, %v760
  %v1141 = vpack.c.b16 %v769, %v765
  %v1142 = vpack.c.b16 %v770, %v766
  %v1143 = vpack.c.b16 %v771, %v767
  %v1144 = vpack.c.b16 %v772, %v768
  %v1145 = vpack.c.b16 %v777, %v773
  %v1146 = vpack.c.b16 %v778, %v774
  %v1147 = vpack.c.b16 %v779, %v775
  %v1148 = vpack.c.b16 %v780, %v776
  %v1149 = vpack.c.b16 %v785, %v781
  %v1150 = vpack.c.b16 %v786, %v782
  %v1151 = vpack.c.b16 %v787, %v783
  %v1152 = vpack.c.b16 %v788, %v784
  %v1153 = vpack.c.b16 %v793, %v789
  %v1154 = vpack.c.b16 %v794, %v790
  %v1155 = vpack.c.b16 %v795, %v791
  %v1156 = vpack.c.b16 %v796, %v792
  %v1157 = vpack.c.b16 %v801, %v797
  %v1158 = vpack.c.b16 %v802, %v798
  %v1159 = vpack.c.b16 %v803, %v799
  %v1160 = vpack.c.b16 %v804, %v800
  %v1161 = vpack.c.b16 %v809, %v805
  %v1162 = vpack.c.b16 %v810, %v806
  %v1163 = vpack.c.b16 %v811, %v807
  %v1164 = vpack.c.b16 %v812, %v808
  %v1165 = vpack.c.b16 %v817, %v813
  %v1166 = vpack.c.b16 %v818, %v814
  %v1167 = vpack.c.b16 %v819, %v815
  %v1168 = vpack.c.b16 %v820, %v816
  %v1169 = vpack.c.b16 %v825, %v821
  %v1170 = vpack.c.b16 %v826, %v822
  %v1171 = vpack.c.b16 %v827, %v823
  %v1172 = vpack.c.b16 %v828, %v824
  %v1173 = vpack.c.b16 %v833, %v829
  %v1174 = vpack.c.b16 %v834, %v830
  %v1175 = vpack.c.b16 %v835, %v831
  %v1176 = vpack.c.b16 %v836, %v832
  %v1177 = vpack.c.b16 %v841, %v837
  %v1178 = vpack.c.b16 %v842, %v838
  %v1179 = vpack.c.b16 %v843, %v839
  %v1180 = vpack.c.b16 %v844, %v840
  %v1181 = vpack.c.b16 %v849, %v845
  %v1182 = vpack.c.b16 %v850, %v846
  %v1183 = vpack.c.b16 %v851, %v847
  %v1184 = vpack.c.b16 %v852, %v848
  %v1185 = vpack.c.b16 %v857, %v853
  %v1186 = vpack.c.b16 %v858, %v854
  %v1187 = vpack.c.b16 %v859, %v855
  %v1188 = vpack.c.b16 %v860, %v856
  %v1189 = vpack.c.b16 %v865, %v861
  %v1190 = vpack.c.b16 %v866, %v862
  %v1191 = vpack.c.b16 %v867, %v863
  %v1192 = vpack.c.b16 %v868, %v864
  %v1193 = vpack.c.b16 %v873, %v869
  %v1194 = vpack.c.b16 %v874, %v870
  %v1195 = vpack.c.b16 %v875, %v871
  %v1196 = vpack.c.b16 %v876, %v872
  %v1197 = vpack.c.b16 %v881, %v877
  %v1198 = vpack.c.b16 %v882, %v878
  %v1199 = vpack.c.b16 %v883, %v879
  %v1200 = vpack.c.b16 %v884, %v880
  %v1201 = vpack.c.b16 %v889, %v885
  %v1202 = vpack.c.b16 %v890, %v886
  %v1203 = vpack.c.b16 %v891, %v887
  %v1204 = vpack.c.b16 %v892, %v888
  %v1205 = vpack.c.b16 %v897, %v893
  %v1206 = vpack.c.b16 %v898, %v894
  %v1207 = vpack.c.b16 %v899, %v895
  %v1208 = vpack.c.b16 %v900, %v896
  %v1209 = vpack.c.b16 %v905, %v901
  %v1210 = vpack.c.b16 %v906, %v902
  %v1211 = vpack.c.b16 %v907, %v903
  %v1212 = vpack.c.b16 %v908, %v904
  %v1213 = vpack.c.b16 %v913, %v909
  %v1214 = vpack.c.b16 %v914, %v910
  %v1215 = vpack.c.b16 %v915, %v911
  %v1216 = vpack.c.b16 %v916, %v912
  %v1217 = vpack.c.b16 %v921, %v917
  %v1218 = vpack.c.b16 %v922, %v918
  %v1219 = vpack.c.b16 %v923, %v919
  %v1220 = vpack.c.b16 %v924, %v920
  %v1221 = vpack.c.b16 %v929, %v925
  %v1222 = vpack.c.b16 %v930, %v926
  %v1223 = vpack.c.b16 %v931, %v927
  %v1224 = vpack.c.b16 %v932, %v928
  %v1225 = vpack.c.b16 %v937, %v933
  %v1226 = vpack.c.b16 %v938, %v934
  %v1227 = vpack.c.b16 %v939, %v935
  %v1228 = vpack.c.b16 %v940, %v936
  %v1229 = vpack.c.b16 %v945, %v941
  %v1230 = vpack.c.b16 %v946, %v942
  %v1231 = vpack.c.b16 %v947, %v943
  %v1232 = vpack.c.b16 %v948, %v944
  %v1233 = vpack.c.b16 %v953, %v949
  %v1234 = vpack.c.b16 %v954, %v950
  %v1235 = vpack.c.b16 %v955, %v951
  %v1236 = vpack.c.b16 %v956, %v952
  %v1237 = vpack.c.b16 %v961, %v957
  %v1238 = vpack.c.b16 %v962, %v958
  %v1239 = vpack.c.b16 %v963, %v959
  %v1240 = vpack.c.b16 %v964, %v960
  %v1241 = vpack.c.b16 %v969, %v965
  %v1242 = vpack.c.b16 %v970, %v966
  %v1243 = vpack.c.b16 %v971, %v967
  %v1244 = vpack.c.b16 %v972, %v968
  %v1245 = vpack.c.b16 %v977, %v973
  %v1246 = vpack.c.b16 %v978, %v974
  %v1247 = vpack.c.b16 %v979, %v975
  %v1248 = vpack.c.b16 %v980, %v976
  %v1249 = vpack.c.b16 %v985, %v981
  %v1250 = vpack.c.b16 %v986, %v982
  %v1251 = vpack.c.b16 %v987, %v983
  %v1252 = vpack.c.b16 %v988, %v984
  %v1253 = vpack.c.b16 %v993, %v989
  %v1254 = vpack.c.b16 %v994, %v990
  %v1255 = vpack.c.b16 %v995, %v991
  %v1256 = vpack.c.b16 %v996, %v992
  %v1257 = vpack.c.b16 %v1001, %v997
  %v1258 = vpack.c.b16 %v1002, %v998
  %v1259 = vpack.c.b16 %v1003, %v999
  %v1260 = vpack.c.b16 %v1004, %v1000
  %v1261 = vpack.c.b16 %v1009, %v1005
  %v1262 = vpack.c.b16 %v1010, %v1006
  %v1263 = vpack.c.b16 %v1011, %v1007
  %v1264 = vpack.c.b16 %v1012, %v1008
  %v1265 = vpack.c.b16 %v1017, %v1013
  %v1266 = vpack.c.b16 %v1018, %v1014
  %v1267 = vpack.c.b16 %v1019, %v1015
  %v1268 = vpack.c.b16 %v1020, %v1016
  %v1269 = vpack.c.b16 %v1025, %v1021
  %v1270 = vpack.c.b16 %v1026, %v1022
  %v1271 = vpack.c.b16 %v1027, %v1023
  %v1272 = vpack.c.b16 %v1028, %v1024
  %v1273 = vpack.c.b16 %v1029, %v1029
  %v1274 = vpack.c.b16 %v1030, %v1030
  %v1275 = vpack.c.b16 %v1031, %v1031
  %v1276 = vpack.c.b16 %v1032, %v1032
  %vm1517 = vcmask 588800
  %v1519 = vsel %vm1517, %v42, 0
  %vm1521 = vcmask 1043456
  %v1523 = vsel %vm1521, %v1273, 0
  %v1526 = vsel %vm1521, %v1274, 0
  %v1529 = vsel %vm1521, %v1275, 0
  %v1532 = vsel %vm1521, %v1276, 0
  %1534 = vmatprep.subr.bf16.mxu0 %v1034
  %1535 = vmatpush1.bf16.msra.mxu0 %v1033
  %1536 = vmatprep.subr.bf16.mxu0 %v1038
  %1537 = vmatpush1.bf16.msra.mxu0 %v1037
  %1538 = vmatprep.subr.bf16.mxu0 %v1042
  %1539 = vmatpush1.bf16.msra.mxu0 %v1041
  %1540 = vmatprep.subr.bf16.mxu0 %v1046
  %1541 = vmatpush1.bf16.msra.mxu0 %v1045
  %1542 = vmatprep.subr.bf16.mxu0 %v1050
  %1543 = vmatpush1.bf16.msra.mxu0 %v1049
  %1544 = vmatprep.subr.bf16.mxu0 %v1054
  %1545 = vmatpush1.bf16.msra.mxu0 %v1053
  %1546 = vmatprep.subr.bf16.mxu0 %v1058
  %1547 = vmatpush1.bf16.msra.mxu0 %v1057
  %1548 = vmatprep.subr.bf16.mxu0 %v1062
  %1549 = vmatpush1.bf16.msra.mxu0 %v1061
  %1550 = vmatprep.subr.bf16.mxu0 %v1066
  %1551 = vmatpush1.bf16.msra.mxu0 %v1065
  %1552 = vmatprep.subr.bf16.mxu0 %v1070
  %1553 = vmatpush1.bf16.msra.mxu0 %v1069
  %1554 = vmatprep.subr.bf16.mxu0 %v1074
  %1555 = vmatpush1.bf16.msra.mxu0 %v1073
  %1556 = vmatprep.subr.bf16.mxu0 %v1078
  %1557 = vmatpush1.bf16.msra.mxu0 %v1077
  %1558 = vmatprep.subr.bf16.mxu0 %v1082
  %1559 = vmatpush1.bf16.msra.mxu0 %v1081
  %1560 = vmatprep.subr.bf16.mxu0 %v1086
  %1561 = vmatpush1.bf16.msra.mxu0 %v1085
  %1562 = vmatprep.subr.bf16.mxu0 %v1090
  %1563 = vmatpush1.bf16.msra.mxu0 %v1089
  %1564 = vmatprep.subr.bf16.mxu0 %v1094
  %1565 = vmatpush1.bf16.msra.mxu0 %v1093
  %1566 = vmatprep.mubr.bf16.mxu0 %v36
  %1567 = vmatmul.mubr.bf16.gmra.mrb[0].mxu0 %v35
  %v1568 = vpop.f32.mrb[0].mxu0
  %v1569 = vadd.f32 %v290, %v1568
  %v1570 = vpop.f32.mrb[0].mxu0
  %v1571 = vadd.f32 %v294, %v1570
  %v1572 = vpop.f32.mrb[0].mxu0
  %v1573 = vpop.f32.mrb[0].mxu0
  %1574 = vdwg.mxu0
  %1575 = vmatprep.subr.bf16.mxu0 %v1098
  %1576 = vmatpush1.bf16.msra.mxu0 %v1097
  %1577 = vmatprep.subr.bf16.mxu0 %v1102
  %1578 = vmatpush1.bf16.msra.mxu0 %v1101
  %1579 = vmatprep.subr.bf16.mxu0 %v1106
  %1580 = vmatpush1.bf16.msra.mxu0 %v1105
  %1581 = vmatprep.subr.bf16.mxu0 %v1110
  %1582 = vmatpush1.bf16.msra.mxu0 %v1109
  %1583 = vmatprep.subr.bf16.mxu0 %v1114
  %1584 = vmatpush1.bf16.msra.mxu0 %v1113
  %1585 = vmatprep.subr.bf16.mxu0 %v1118
  %1586 = vmatpush1.bf16.msra.mxu0 %v1117
  %1587 = vmatprep.subr.bf16.mxu0 %v1122
  %1588 = vmatpush1.bf16.msra.mxu0 %v1121
  %1589 = vmatprep.subr.bf16.mxu0 %v1126
  %1590 = vmatpush1.bf16.msra.mxu0 %v1125
  %1591 = vmatprep.subr.bf16.mxu0 %v1130
  %1592 = vmatpush1.bf16.msra.mxu0 %v1129
  %1593 = vmatprep.subr.bf16.mxu0 %v1134
  %1594 = vmatpush1.bf16.msra.mxu0 %v1133
  %1595 = vmatprep.subr.bf16.mxu0 %v1138
  %1596 = vmatpush1.bf16.msra.mxu0 %v1137
  %1597 = vmatprep.subr.bf16.mxu0 %v1142
  %1598 = vmatpush1.bf16.msra.mxu0 %v1141
  %1599 = vmatprep.subr.bf16.mxu0 %v1146
  %1600 = vmatpush1.bf16.msra.mxu0 %v1145
  %1601 = vmatprep.subr.bf16.mxu0 %v1150
  %1602 = vmatpush1.bf16.msra.mxu0 %v1149
  %1603 = vmatprep.subr.bf16.mxu0 %v1154
  %1604 = vmatpush1.bf16.msra.mxu0 %v1153
  %1605 = vmatprep.subr.bf16.mxu0 %v1158
  %1606 = vmatpush1.bf16.msra.mxu0 %v1157
  %1607 = vmatprep.mubr.bf16.mxu0 %v38
  %1608 = vmatmul.mubr.bf16.gmra.mrb[0].mxu0 %v37
  %v1609 = vpop.f32.mrb[0].mxu0
  %v1610 = vadd.f32 %v1569, %v1609
  %v1611 = vpop.f32.mrb[0].mxu0
  %v1612 = vadd.f32 %v1571, %v1611
  %v1613 = vpop.f32.mrb[0].mxu0
  %v1614 = vpop.f32.mrb[0].mxu0
  %1615 = vdwg.mxu0
  %1616 = vmatprep.subr.bf16.mxu0 %v1162
  %1617 = vmatpush1.bf16.msra.mxu0 %v1161
  %1618 = vmatprep.subr.bf16.mxu0 %v1166
  %1619 = vmatpush1.bf16.msra.mxu0 %v1165
  %1620 = vmatprep.subr.bf16.mxu0 %v1170
  %1621 = vmatpush1.bf16.msra.mxu0 %v1169
  %1622 = vmatprep.subr.bf16.mxu0 %v1174
  %1623 = vmatpush1.bf16.msra.mxu0 %v1173
  %1624 = vmatprep.subr.bf16.mxu0 %v1178
  %1625 = vmatpush1.bf16.msra.mxu0 %v1177
  %1626 = vmatprep.subr.bf16.mxu0 %v1182
  %1627 = vmatpush1.bf16.msra.mxu0 %v1181
  %1628 = vmatprep.subr.bf16.mxu0 %v1186
  %1629 = vmatpush1.bf16.msra.mxu0 %v1185
  %1630 = vmatprep.subr.bf16.mxu0 %v1190
  %1631 = vmatpush1.bf16.msra.mxu0 %v1189
  %1632 = vmatprep.subr.bf16.mxu0 %v1194
  %1633 = vmatpush1.bf16.msra.mxu0 %v1193
  %1634 = vmatprep.subr.bf16.mxu0 %v1198
  %1635 = vmatpush1.bf16.msra.mxu0 %v1197
  %1636 = vmatprep.subr.bf16.mxu0 %v1202
  %1637 = vmatpush1.bf16.msra.mxu0 %v1201
  %1638 = vmatprep.subr.bf16.mxu0 %v1206
  %1639 = vmatpush1.bf16.msra.mxu0 %v1205
  %1640 = vmatprep.subr.bf16.mxu0 %v1210
  %1641 = vmatpush1.bf16.msra.mxu0 %v1209
  %1642 = vmatprep.subr.bf16.mxu0 %v1214
  %1643 = vmatpush1.bf16.msra.mxu0 %v1213
  %1644 = vmatprep.subr.bf16.mxu0 %v1218
  %1645 = vmatpush1.bf16.msra.mxu0 %v1217
  %1646 = vmatprep.subr.bf16.mxu0 %v1222
  %1647 = vmatpush1.bf16.msra.mxu0 %v1221
  %1648 = vmatprep.mubr.bf16.mxu0 %v40
  %1649 = vmatmul.mubr.bf16.gmra.mrb[0].mxu0 %v39
  %v1650 = vpop.f32.mrb[0].mxu0
  %v1651 = vadd.f32 %v1610, %v1650
  %v1652 = vpop.f32.mrb[0].mxu0
  %v1653 = vadd.f32 %v1612, %v1652
  %v1654 = vpop.f32.mrb[0].mxu0
  %v1655 = vpop.f32.mrb[0].mxu0
  %1656 = vdwg.mxu0
  %1657 = vmatprep.subr.bf16.mxu0 %v1226
  %1658 = vmatpush1.bf16.msra.mxu0 %v1225
  %1659 = vmatprep.subr.bf16.mxu0 %v1230
  %1660 = vmatpush1.bf16.msra.mxu0 %v1229
  %1661 = vmatprep.subr.bf16.mxu0 %v1234
  %1662 = vmatpush1.bf16.msra.mxu0 %v1233
  %1663 = vmatprep.subr.bf16.mxu0 %v1238
  %1664 = vmatpush1.bf16.msra.mxu0 %v1237
  %1665 = vmatprep.subr.bf16.mxu0 %v1242
  %1666 = vmatpush1.bf16.msra.mxu0 %v1241
  %1667 = vmatprep.subr.bf16.mxu0 %v1246
  %1668 = vmatpush1.bf16.msra.mxu0 %v1245
  %1669 = vmatprep.subr.bf16.mxu0 %v1250
  %1670 = vmatpush1.bf16.msra.mxu0 %v1249
  %1671 = vmatprep.subr.bf16.mxu0 %v1254
  %1672 = vmatpush1.bf16.msra.mxu0 %v1253
  %1673 = vmatprep.subr.bf16.mxu0 %v1258
  %1674 = vmatpush1.bf16.msra.mxu0 %v1257
  %1675 = vmatprep.subr.bf16.mxu0 %v1262
  %1676 = vmatpush1.bf16.msra.mxu0 %v1261
  %1677 = vmatprep.subr.bf16.mxu0 %v1266
  %1678 = vmatpush1.bf16.msra.mxu0 %v1265
  %1679 = vmatprep.subr.bf16.mxu0 %v1270
  %1680 = vmatpush1.bf16.msra.mxu0 %v1269
  %1681 = vmatprep.subr.bf16.mxu0 %v1526
  %1682 = vmatpush1.bf16.msra.mxu0 %v1523
  %1683 = vmatprep.subr.bf16.mxu0 0
  %1684 = vmatpush1.bf16.msra.mxu0 0
  %1685 = vmatprep.subr.bf16.mxu0 0
  %1686 = vmatpush1.bf16.msra.mxu0 0
  %1687 = vmatprep.subr.bf16.mxu0 0
  %1688 = vmatpush1.bf16.msra.mxu0 0
  %1689 = vmatprep.mubr.bf16.mxu0 %v1519
  %1690 = vmatmul.mubr.bf16.gmra.mrb[0].mxu0 %v41
  %v1691 = vpop.f32.mrb[0].mxu0
  %v1692 = vadd.f32 %v1651, %v1691
  %v1693 = vpop.f32.mrb[0].mxu0
  %v1694 = vadd.f32 %v1653, %v1693
  %v1695 = vpop.f32.mrb[0].mxu0
  %v1696 = vpop.f32.mrb[0].mxu0
  %1697 = vdwg.mxu0
  %1698 = vmatprep.subr.bf16.mxu0 %v1036
  %1699 = vmatpush1.bf16.msra.mxu0 %v1035
  %1700 = vmatprep.subr.bf16.mxu0 %v1040
  %1701 = vmatpush1.bf16.msra.mxu0 %v1039
  %1702 = vmatprep.subr.bf16.mxu0 %v1044
  %1703 = vmatpush1.bf16.msra.mxu0 %v1043
  %1704 = vmatprep.subr.bf16.mxu0 %v1048
  %1705 = vmatpush1.bf16.msra.mxu0 %v1047
  %1706 = vmatprep.subr.bf16.mxu0 %v1052
  %1707 = vmatpush1.bf16.msra.mxu0 %v1051
  %1708 = vmatprep.subr.bf16.mxu0 %v1056
  %1709 = vmatpush1.bf16.msra.mxu0 %v1055
  %1710 = vmatprep.subr.bf16.mxu0 %v1060
  %1711 = vmatpush1.bf16.msra.mxu0 %v1059
  %1712 = vmatprep.subr.bf16.mxu0 %v1064
  %1713 = vmatpush1.bf16.msra.mxu0 %v1063
  %1714 = vmatprep.subr.bf16.mxu0 %v1068
  %1715 = vmatpush1.bf16.msra.mxu0 %v1067
  %1716 = vmatprep.subr.bf16.mxu0 %v1072
  %1717 = vmatpush1.bf16.msra.mxu0 %v1071
  %1718 = vmatprep.subr.bf16.mxu0 %v1076
  %1719 = vmatpush1.bf16.msra.mxu0 %v1075
  %1720 = vmatprep.subr.bf16.mxu0 %v1080
  %1721 = vmatpush1.bf16.msra.mxu0 %v1079
  %1722 = vmatprep.subr.bf16.mxu0 %v1084
  %1723 = vmatpush1.bf16.msra.mxu0 %v1083
  %1724 = vmatprep.subr.bf16.mxu0 %v1088
  %1725 = vmatpush1.bf16.msra.mxu0 %v1087
  %1726 = vmatprep.subr.bf16.mxu0 %v1092
  %1727 = vmatpush1.bf16.msra.mxu0 %v1091
  %1728 = vmatprep.subr.bf16.mxu0 %v1096
  %1729 = vmatpush1.bf16.msra.mxu0 %v1095
  %1730 = vmatprep.mubr.bf16.mxu0 %v36
  %1731 = vmatmul.mubr.bf16.gmra.mrb[0].mxu0 %v35
  %v1732 = vpop.f32.mrb[0].mxu0
  %v1733 = vadd.f32 %v298, %v1732
  %v1734 = vpop.f32.mrb[0].mxu0
  %v1735 = vadd.f32 %v302, %v1734
  %v1736 = vpop.f32.mrb[0].mxu0
  %v1737 = vpop.f32.mrb[0].mxu0
  %1738 = vdwg.mxu0
  %1739 = vmatprep.subr.bf16.mxu0 %v1100
  %1740 = vmatpush1.bf16.msra.mxu0 %v1099
  %1741 = vmatprep.subr.bf16.mxu0 %v1104
  %1742 = vmatpush1.bf16.msra.mxu0 %v1103
  %1743 = vmatprep.subr.bf16.mxu0 %v1108
  %1744 = vmatpush1.bf16.msra.mxu0 %v1107
  %1745 = vmatprep.subr.bf16.mxu0 %v1112
  %1746 = vmatpush1.bf16.msra.mxu0 %v1111
  %1747 = vmatprep.subr.bf16.mxu0 %v1116
  %1748 = vmatpush1.bf16.msra.mxu0 %v1115
  %1749 = vmatprep.subr.bf16.mxu0 %v1120
  %1750 = vmatpush1.bf16.msra.mxu0 %v1119
  %1751 = vmatprep.subr.bf16.mxu0 %v1124
  %1752 = vmatpush1.bf16.msra.mxu0 %v1123
  %1753 = vmatprep.subr.bf16.mxu0 %v1128
  %1754 = vmatpush1.bf16.msra.mxu0 %v1127
  %1755 = vmatprep.subr.bf16.mxu0 %v1132
  %1756 = vmatpush1.bf16.msra.mxu0 %v1131
  %1757 = vmatprep.subr.bf16.mxu0 %v1136
  %1758 = vmatpush1.bf16.msra.mxu0 %v1135
  %1759 = vmatprep.subr.bf16.mxu0 %v1140
  %1760 = vmatpush1.bf16.msra.mxu0 %v1139
  %1761 = vmatprep.subr.bf16.mxu0 %v1144
  %1762 = vmatpush1.bf16.msra.mxu0 %v1143
  %1763 = vmatprep.subr.bf16.mxu0 %v1148
  %1764 = vmatpush1.bf16.msra.mxu0 %v1147
  %1765 = vmatprep.subr.bf16.mxu0 %v1152
  %1766 = vmatpush1.bf16.msra.mxu0 %v1151
  %1767 = vmatprep.subr.bf16.mxu0 %v1156
  %1768 = vmatpush1.bf16.msra.mxu0 %v1155
  %1769 = vmatprep.subr.bf16.mxu0 %v1160
  %1770 = vmatpush1.bf16.msra.mxu0 %v1159
  %1771 = vmatprep.mubr.bf16.mxu0 %v38
  %1772 = vmatmul.mubr.bf16.gmra.mrb[0].mxu0 %v37
  %v1773 = vpop.f32.mrb[0].mxu0
  %v1774 = vadd.f32 %v1733, %v1773
  %v1775 = vpop.f32.mrb[0].mxu0
  %v1776 = vadd.f32 %v1735, %v1775
  %v1777 = vpop.f32.mrb[0].mxu0
  %v1778 = vpop.f32.mrb[0].mxu0
  %1779 = vdwg.mxu0
  %1780 = vmatprep.subr.bf16.mxu0 %v1164
  %1781 = vmatpush1.bf16.msra.mxu0 %v1163
  %1782 = vmatprep.subr.bf16.mxu0 %v1168
  %1783 = vmatpush1.bf16.msra.mxu0 %v1167
  %1784 = vmatprep.subr.bf16.mxu0 %v1172
  %1785 = vmatpush1.bf16.msra.mxu0 %v1171
  %1786 = vmatprep.subr.bf16.mxu0 %v1176
  %1787 = vmatpush1.bf16.msra.mxu0 %v1175
  %1788 = vmatprep.subr.bf16.mxu0 %v1180
  %1789 = vmatpush1.bf16.msra.mxu0 %v1179
  %1790 = vmatprep.subr.bf16.mxu0 %v1184
  %1791 = vmatpush1.bf16.msra.mxu0 %v1183
  %1792 = vmatprep.subr.bf16.mxu0 %v1188
  %1793 = vmatpush1.bf16.msra.mxu0 %v1187
  %1794 = vmatprep.subr.bf16.mxu0 %v1192
  %1795 = vmatpush1.bf16.msra.mxu0 %v1191
  %1796 = vmatprep.subr.bf16.mxu0 %v1196
  %1797 = vmatpush1.bf16.msra.mxu0 %v1195
  %1798 = vmatprep.subr.bf16.mxu0 %v1200
  %1799 = vmatpush1.bf16.msra.mxu0 %v1199
  %1800 = vmatprep.subr.bf16.mxu0 %v1204
  %1801 = vmatpush1.bf16.msra.mxu0 %v1203
  %1802 = vmatprep.subr.bf16.mxu0 %v1208
  %1803 = vmatpush1.bf16.msra.mxu0 %v1207
  %1804 = vmatprep.subr.bf16.mxu0 %v1212
  %1805 = vmatpush1.bf16.msra.mxu0 %v1211
  %1806 = vmatprep.subr.bf16.mxu0 %v1216
  %1807 = vmatpush1.bf16.msra.mxu0 %v1215
  %1808 = vmatprep.subr.bf16.mxu0 %v1220
  %1809 = vmatpush1.bf16.msra.mxu0 %v1219
  %1810 = vmatprep.subr.bf16.mxu0 %v1224
  %1811 = vmatpush1.bf16.msra.mxu0 %v1223
  %1812 = vmatprep.mubr.bf16.mxu0 %v40
  %1813 = vmatmul.mubr.bf16.gmra.mrb[0].mxu0 %v39
  %v1814 = vpop.f32.mrb[0].mxu0
  %v1815 = vadd.f32 %v1774, %v1814
  %v1816 = vpop.f32.mrb[0].mxu0
  %v1817 = vadd.f32 %v1776, %v1816
  %v1818 = vpop.f32.mrb[0].mxu0
  %v1819 = vpop.f32.mrb[0].mxu0
  %1820 = vdwg.mxu0
  %1821 = vmatprep.subr.bf16.mxu0 %v1228
  %1822 = vmatpush1.bf16.msra.mxu0 %v1227
  %1823 = vmatprep.subr.bf16.mxu0 %v1232
  %1824 = vmatpush1.bf16.msra.mxu0 %v1231
  %1825 = vmatprep.subr.bf16.mxu0 %v1236
  %1826 = vmatpush1.bf16.msra.mxu0 %v1235
  %1827 = vmatprep.subr.bf16.mxu0 %v1240
  %1828 = vmatpush1.bf16.msra.mxu0 %v1239
  %1829 = vmatprep.subr.bf16.mxu0 %v1244
  %1830 = vmatpush1.bf16.msra.mxu0 %v1243
  %1831 = vmatprep.subr.bf16.mxu0 %v1248
  %1832 = vmatpush1.bf16.msra.mxu0 %v1247
  %1833 = vmatprep.subr.bf16.mxu0 %v1252
  %1834 = vmatpush1.bf16.msra.mxu0 %v1251
  %1835 = vmatprep.subr.bf16.mxu0 %v1256
  %1836 = vmatpush1.bf16.msra.mxu0 %v1255
  %1837 = vmatprep.subr.bf16.mxu0 %v1260
  %1838 = vmatpush1.bf16.msra.mxu0 %v1259
  %1839 = vmatprep.subr.bf16.mxu0 %v1264
  %1840 = vmatpush1.bf16.msra.mxu0 %v1263
  %1841 = vmatprep.subr.bf16.mxu0 %v1268
  %1842 = vmatpush1.bf16.msra.mxu0 %v1267
  %1843 = vmatprep.subr.bf16.mxu0 %v1272
  %1844 = vmatpush1.bf16.msra.mxu0 %v1271
  %1845 = vmatprep.subr.bf16.mxu0 %v1532
  %1846 = vmatpush1.bf16.msra.mxu0 %v1529
  %1847 = vmatprep.subr.bf16.mxu0 0
  %1848 = vmatpush1.bf16.msra.mxu0 0
  %1849 = vmatprep.subr.bf16.mxu0 0
  %1850 = vmatpush1.bf16.msra.mxu0 0
  %1851 = vmatprep.subr.bf16.mxu0 0
  %1852 = vmatpush1.bf16.msra.mxu0 0
  %1853 = vmatprep.mubr.bf16.mxu0 %v1519
  %1854 = vmatmul.mubr.bf16.gmra.mrb[0].mxu0 %v41
  %v1855 = vpop.f32.mrb[0].mxu0
  %v1856 = vadd.f32 %v1815, %v1855
  %v1857 = vpop.f32.mrb[0].mxu0
  %v1858 = vadd.f32 %v1817, %v1857
  %v1859 = vpop.f32.mrb[0].mxu0
  %v1860 = vpop.f32.mrb[0].mxu0
  %1861 = vdwg.mxu0
  %v1862 = vpack.c.bf16 %v1692, %v1692
  %v1863 = vpack.c.bf16 %v1694, %v1694
  %v1864 = vpack.c.bf16 %v1856, %v1856
  %v1865 = vpack.c.bf16 %v1858, %v1858
  %v1866 = vld [vmem:[%s3] sm:$0xf]
  %v1867 = vld [vmem:[%s3 + $0x4] sm:$0xf]
  %v1868 = vld [vmem:[%s3 + $0x8] sm:$0xf]
  %v1869 = vld [vmem:[%s3 + $0xc] sm:$0xf]
  %v1870 = vld [vmem:[%s3 + $0x10] sm:$0xf]
  %v1871 = vld [vmem:[%s3 + $0x14] sm:$0xf]
  %v1872 = vld [vmem:[%s3 + $0x18] sm:$0xf]
  %v1873 = vld [vmem:[%s3 + $0x1c] sm:$0xf]
  %v1874 = vld [vmem:[%s3 + $0x20] sm:$0xf]
  %v1875 = vld [vmem:[%s3 + $0x24] sm:$0xf]
  %v1876 = vld [vmem:[%s3 + $0x28] sm:$0xf]
  %v1877 = vld [vmem:[%s3 + $0x2c] sm:$0xf]
  %v1878 = vld [vmem:[%s3 + $0x30] sm:$0xf]
  %v1879 = vld [vmem:[%s3 + $0x34] sm:$0xf]
  %v1880 = vld [vmem:[%s3 + $0x38] sm:$0xf]
  %v1881 = vld [vmem:[%s3 + $0x3c] sm:$0xf]
  %v1882 = vld [vmem:[%s3 + $0x40] sm:$0xf]
  %v1883 = vld [vmem:[%s3 + $0x44] sm:$0xf]
  %v1884 = vld [vmem:[%s3 + $0x48] sm:$0xf]
  %v1885 = vld [vmem:[%s3 + $0x4c] sm:$0xf]
  %v1886 = vld [vmem:[%s3 + $0x50] sm:$0xf]
  %v1887 = vld [vmem:[%s3 + $0x54] sm:$0xf]
  %v1888 = vld [vmem:[%s3 + $0x58] sm:$0xf]
  %v1889 = vld [vmem:[%s3 + $0x5c] sm:$0xf]
  %v1890 = vld [vmem:[%s3 + $0x60] sm:$0xf]
  %v1891 = vld [vmem:[%s3 + $0x64] sm:$0xf]
  %v1892 = vld [vmem:[%s3 + $0x68] sm:$0xf]
  %v1893 = vld [vmem:[%s3 + $0x6c] sm:$0xf]
  %v1894 = vld [vmem:[%s3 + $0x70] sm:$0xf]
  %v1895 = vld [vmem:[%s3 + $0x74] sm:$0xf]
  %v1896 = vld [vmem:[%s3 + $0x78] sm:$0xf]
  %v1897 = vld [vmem:[%s3 + $0x7c] sm:$0xf]
  %v1898 = vld [vmem:[%s3 + $0x80] sm:$0xf]
  %v1899 = vld [vmem:[%s3 + $0x84] sm:$0xf]
  %v1900 = vld [vmem:[%s3 + $0x88] sm:$0xf]
  %v1901 = vld [vmem:[%s3 + $0x8c] sm:$0xf]
  %v1902 = vld [vmem:[%s3 + $0x90] sm:$0xf]
  %v1903 = vld [vmem:[%s3 + $0x94] sm:$0xf]
  %v1904 = vld [vmem:[%s3 + $0x98] sm:$0xf]
  %v1905 = vld [vmem:[%s3 + $0x9c] sm:$0xf]
  %v1906 = vld [vmem:[%s3 + $0xa0] sm:$0xf]
  %v1907 = vld [vmem:[%s3 + $0xa4] sm:$0xf]
  %v1908 = vld [vmem:[%s3 + $0xa8] sm:$0xf]
  %v1909 = vld [vmem:[%s3 + $0xac] sm:$0xf]
  %v1910 = vld [vmem:[%s3 + $0xb0] sm:$0xf]
  %v1911 = vld [vmem:[%s3 + $0xb4] sm:$0xf]
  %v1912 = vld [vmem:[%s3 + $0xb8] sm:$0xf]
  %v1913 = vld [vmem:[%s3 + $0xbc] sm:$0xf]
  %v1914 = vld [vmem:[%s3 + $0xc0] sm:$0xf]
  %v1915 = vld [vmem:[%s3 + $0xc4] sm:$0xf]
  %v1916 = vld [vmem:[%s4] sm:$0x1]
  %v1918 = vlaneseq
  %v1919 = vshrl.u32 %v1918, 7
  %v1920 = vsub.s32 0, %v1919
  %v1921 = vrot.slane %v1916, %v1920
  %v1973 = vunpack.c.l.b16 %v1866
  %v1974 = vunpack.c.l.b16 %v1867
  %v1975 = vunpack.c.l.b16 %v1868
  %v1976 = vunpack.c.l.b16 %v1869
  %v1977 = vunpack.c.l.b16 %v1870
  %v1978 = vunpack.c.l.b16 %v1871
  %v1979 = vunpack.c.l.b16 %v1872
  %v1980 = vunpack.c.l.b16 %v1873
  %v1981 = vunpack.c.l.b16 %v1874
  %v1982 = vunpack.c.l.b16 %v1875
  %v1983 = vunpack.c.l.b16 %v1876
  %v1984 = vunpack.c.l.b16 %v1877
  %v1985 = vunpack.c.l.b16 %v1878
  %v1986 = vunpack.c.l.b16 %v1879
  %v1987 = vunpack.c.l.b16 %v1880
  %v1988 = vunpack.c.l.b16 %v1881
  %v1989 = vunpack.c.l.b16 %v1882
  %v1990 = vunpack.c.l.b16 %v1883
  %v1991 = vunpack.c.l.b16 %v1884
  %v1992 = vunpack.c.l.b16 %v1885
  %v1993 = vunpack.c.l.b16 %v1886
  %v1994 = vunpack.c.l.b16 %v1887
  %v1995 = vunpack.c.l.b16 %v1888
  %v1996 = vunpack.c.l.b16 %v1889
  %v1997 = vunpack.c.l.b16 %v1890
  %v1998 = vunpack.c.l.b16 %v1891
  %v1999 = vunpack.c.l.b16 %v1892
  %v2000 = vunpack.c.l.b16 %v1893
  %v2001 = vunpack.c.l.b16 %v1894
  %v2002 = vunpack.c.l.b16 %v1895
  %v2003 = vunpack.c.l.b16 %v1896
  %v2004 = vunpack.c.l.b16 %v1897
  %v2005 = vunpack.c.l.b16 %v1898
  %v2006 = vunpack.c.l.b16 %v1899
  %v2007 = vunpack.c.l.b16 %v1900
  %v2008 = vunpack.c.l.b16 %v1901
  %v2009 = vunpack.c.l.b16 %v1902
  %v2010 = vunpack.c.l.b16 %v1903
  %v2011 = vunpack.c.l.b16 %v1904
  %v2012 = vunpack.c.l.b16 %v1905
  %v2013 = vunpack.c.l.b16 %v1906
  %v2014 = vunpack.c.l.b16 %v1907
  %v2015 = vunpack.c.l.b16 %v1908
  %v2016 = vunpack.c.l.b16 %v1909
  %v2017 = vunpack.c.l.b16 %v1910
  %v2018 = vunpack.c.l.b16 %v1911
  %v2019 = vunpack.c.l.b16 %v1912
  %v2020 = vunpack.c.l.b16 %v1913
  %v2021 = vunpack.c.l.b16 %v1914
  %v2022 = vunpack.c.l.b16 %v1915
  %v2023 = vpack.c.b16 %v1974, %v1973
  %v2024 = vpack.c.b16 %v1976, %v1975
  %v2025 = vpack.c.b16 %v1978, %v1977
  %v2026 = vpack.c.b16 %v1980, %v1979
  %v2027 = vpack.c.b16 %v1982, %v1981
  %v2028 = vpack.c.b16 %v1984, %v1983
  %v2029 = vpack.c.b16 %v1986, %v1985
  %v2030 = vpack.c.b16 %v1988, %v1987
  %v2031 = vpack.c.b16 %v1990, %v1989
  %v2032 = vpack.c.b16 %v1992, %v1991
  %v2033 = vpack.c.b16 %v1994, %v1993
  %v2034 = vpack.c.b16 %v1996, %v1995
  %v2035 = vpack.c.b16 %v1998, %v1997
  %v2036 = vpack.c.b16 %v2000, %v1999
  %v2037 = vpack.c.b16 %v2002, %v2001
  %v2038 = vpack.c.b16 %v2004, %v2003
  %v2039 = vpack.c.b16 %v2006, %v2005
  %v2040 = vpack.c.b16 %v2008, %v2007
  %v2041 = vpack.c.b16 %v2010, %v2009
  %v2042 = vpack.c.b16 %v2012, %v2011
  %v2043 = vpack.c.b16 %v2014, %v2013
  %v2044 = vpack.c.b16 %v2016, %v2015
  %v2045 = vpack.c.b16 %v2018, %v2017
  %v2046 = vpack.c.b16 %v2020, %v2019
  %v2047 = vpack.c.b16 %v2022, %v2021
  %vm2073 = vcmask 130048
  %v2075 = vsel %vm2073, %v1865, 0
  %2077 = vmatprep.subr.bf16.mxu0 0
  %2078 = vmatpush1.bf16.msra.mxu0 %v2023
  %2079 = vmatprep.subr.bf16.mxu0 0
  %2080 = vmatpush1.bf16.msra.mxu0 %v2024
  %2081 = vmatprep.subr.bf16.mxu0 0
  %2082 = vmatpush1.bf16.msra.mxu0 %v2025
  %2083 = vmatprep.subr.bf16.mxu0 0
  %2084 = vmatpush1.bf16.msra.mxu0 %v2026
  %2085 = vmatprep.subr.bf16.mxu0 0
  %2086 = vmatpush1.bf16.msra.mxu0 %v2027
  %2087 = vmatprep.subr.bf16.mxu0 0
  %2088 = vmatpush1.bf16.msra.mxu0 %v2028
  %2089 = vmatprep.subr.bf16.mxu0 0
  %2090 = vmatpush1.bf16.msra.mxu0 %v2029
  %2091 = vmatprep.subr.bf16.mxu0 0
  %2092 = vmatpush1.bf16.msra.mxu0 %v2030
  %2093 = vmatprep.subr.bf16.mxu0 0
  %2094 = vmatpush1.bf16.msra.mxu0 %v2031
  %2095 = vmatprep.subr.bf16.mxu0 0
  %2096 = vmatpush1.bf16.msra.mxu0 %v2032
  %2097 = vmatprep.subr.bf16.mxu0 0
  %2098 = vmatpush1.bf16.msra.mxu0 %v2033
  %2099 = vmatprep.subr.bf16.mxu0 0
  %2100 = vmatpush1.bf16.msra.mxu0 %v2034
  %2101 = vmatprep.subr.bf16.mxu0 0
  %2102 = vmatpush1.bf16.msra.mxu0 %v2035
  %2103 = vmatprep.subr.bf16.mxu0 0
  %2104 = vmatpush1.bf16.msra.mxu0 %v2036
  %2105 = vmatprep.subr.bf16.mxu0 0
  %2106 = vmatpush1.bf16.msra.mxu0 %v2037
  %2107 = vmatprep.subr.bf16.mxu0 0
  %2108 = vmatpush1.bf16.msra.mxu0 %v2038
  %2109 = vmatprep.mubr.bf16.mxu0 %v1863
  %2110 = vmatmul.mubr.bf16.gmra.mrb[0].mxu0 %v1862
  %v2111 = vpop.f32.mrb[0].mxu0
  %v2112 = vadd.f32 %v1921, %v2111
  %v2113 = vpop.f32.mrb[0].mxu0
  %v2114 = vpop.f32.mrb[0].mxu0
  %v2115 = vpop.f32.mrb[0].mxu0
  %2116 = vdwg.mxu0
  %2117 = vmatprep.subr.bf16.mxu0 0
  %2118 = vmatpush1.bf16.msra.mxu0 %v2039
  %2119 = vmatprep.subr.bf16.mxu0 0
  %2120 = vmatpush1.bf16.msra.mxu0 %v2040
  %2121 = vmatprep.subr.bf16.mxu0 0
  %2122 = vmatpush1.bf16.msra.mxu0 %v2041
  %2123 = vmatprep.subr.bf16.mxu0 0
  %2124 = vmatpush1.bf16.msra.mxu0 %v2042
  %2125 = vmatprep.subr.bf16.mxu0 0
  %2126 = vmatpush1.bf16.msra.mxu0 %v2043
  %2127 = vmatprep.subr.bf16.mxu0 0
  %2128 = vmatpush1.bf16.msra.mxu0 %v2044
  %2129 = vmatprep.subr.bf16.mxu0 0
  %2130 = vmatpush1.bf16.msra.mxu0 %v2045
  %2131 = vmatprep.subr.bf16.mxu0 0
  %2132 = vmatpush1.bf16.msra.mxu0 %v2046
  %2133 = vmatprep.subr.bf16.mxu0 0
  %2134 = vmatpush1.bf16.msra.mxu0 %v2047
  %2135 = vmatprep.subr.bf16.mxu0 0
  %2136 = vmatpush1.bf16.msra.mxu0 0
  %2137 = vmatprep.subr.bf16.mxu0 0
  %2138 = vmatpush1.bf16.msra.mxu0 0
  %2139 = vmatprep.subr.bf16.mxu0 0
  %2140 = vmatpush1.bf16.msra.mxu0 0
  %2141 = vmatprep.subr.bf16.mxu0 0
  %2142 = vmatpush1.bf16.msra.mxu0 0
  %2143 = vmatprep.subr.bf16.mxu0 0
  %2144 = vmatpush1.bf16.msra.mxu0 0
  %2145 = vmatprep.subr.bf16.mxu0 0
  %2146 = vmatpush1.bf16.msra.mxu0 0
  %2147 = vmatprep.subr.bf16.mxu0 0
  %2148 = vmatpush1.bf16.msra.mxu0 0
  %2149 = vmatprep.mubr.bf16.mxu0 %v2075
  %2150 = vmatmul.mubr.bf16.gmra.mrb[0].mxu0 %v1864
  %v2151 = vpop.f32.mrb[0].mxu0
  %v2152 = vadd.f32 %v2112, %v2151
  %v2153 = vpop.f32.mrb[0].mxu0
  %v2154 = vpop.f32.mrb[0].mxu0
  %v2155 = vpop.f32.mrb[0].mxu0
  %2156 = vdwg.mxu0
  %v2157 = vpack.c.bf16 %v2152, %v2152
  %v2158 = vld [vmem:[%s5] sm:$0xf]
  %v2159 = vld [vmem:[%s5 + $0x4] sm:$0xf]
  %v2160 = vld [vmem:[%s5 + $0x8] sm:$0xf]
  %v2161 = vld [vmem:[%s5 + $0xc] sm:$0xf]
  %v2162 = vld [vmem:[%s5 + $0x10] sm:$0xf]
  %v2163 = vld [vmem:[%s5 + $0x14] sm:$0xf]
  %v2164 = vld [vmem:[%s5 + $0x18] sm:$0x1]
  %v2165 = vld [vmem:[%s6] sm:$0x1]
  %v2167 = vlaneseq
  %v2168 = vshrl.u32 %v2167, 7
  %v2169 = vsub.s32 0, %v2168
  %v2170 = vrot.slane %v2165, %v2169
  %v2179 = vunpack.c.l.b16 %v2158
  %v2180 = vunpack.c.l.b16 %v2159
  %v2181 = vunpack.c.l.b16 %v2160
  %v2182 = vunpack.c.l.b16 %v2161
  %v2183 = vunpack.c.l.b16 %v2162
  %v2184 = vunpack.c.l.b16 %v2163
  %v2185 = vunpack.c.l.b16 %v2164
  %v2186 = vpack.c.b16 %v2180, %v2179
  %v2187 = vpack.c.b16 %v2182, %v2181
  %v2188 = vpack.c.b16 %v2184, %v2183
  %v2189 = vpack.c.b16 %v2185, %v2185
  %vm2193 = vcmask 408576
  %v2195 = vsel %vm2193, %v2157, 0
  %vm2197 = vcmask 1040384
  %v2199 = vsel %vm2197, %v2189, 0
  %2201 = vmatprep.subr.bf16.mxu0 0
  %2202 = vmatpush1.bf16.msra.mxu0 %v2186
  %2203 = vmatprep.subr.bf16.mxu0 0
  %2204 = vmatpush1.bf16.msra.mxu0 %v2187
  %2205 = vmatprep.subr.bf16.mxu0 0
  %2206 = vmatpush1.bf16.msra.mxu0 %v2188
  %2207 = vmatprep.subr.bf16.mxu0 0
  %2208 = vmatpush1.bf16.msra.mxu0 %v2199
  %2209 = vmatprep.subr.bf16.mxu0 0
  %2210 = vmatpush1.bf16.msra.mxu0 0
  %2211 = vmatprep.subr.bf16.mxu0 0
  %2212 = vmatpush1.bf16.msra.mxu0 0
  %2213 = vmatprep.subr.bf16.mxu0 0
  %2214 = vmatpush1.bf16.msra.mxu0 0
  %2215 = vmatprep.subr.bf16.mxu0 0
  %2216 = vmatpush1.bf16.msra.mxu0 0
  %2217 = vmatprep.subr.bf16.mxu0 0
  %2218 = vmatpush1.bf16.msra.mxu0 0
  %2219 = vmatprep.subr.bf16.mxu0 0
  %2220 = vmatpush1.bf16.msra.mxu0 0
  %2221 = vmatprep.subr.bf16.mxu0 0
  %2222 = vmatpush1.bf16.msra.mxu0 0
  %2223 = vmatprep.subr.bf16.mxu0 0
  %2224 = vmatpush1.bf16.msra.mxu0 0
  %2225 = vmatprep.subr.bf16.mxu0 0
  %2226 = vmatpush1.bf16.msra.mxu0 0
  %2227 = vmatprep.subr.bf16.mxu0 0
  %2228 = vmatpush1.bf16.msra.mxu0 0
  %2229 = vmatprep.subr.bf16.mxu0 0
  %2230 = vmatpush1.bf16.msra.mxu0 0
  %2231 = vmatprep.subr.bf16.mxu0 0
  %2232 = vmatpush1.bf16.msra.mxu0 0
  %2233 = vmatprep.mubr.bf16.mxu0 0
  %2234 = vmatmul.mubr.bf16.gmra.mrb[0].mxu0 %v2195
  %v2235 = vpop.f32.mrb[0].mxu0
  %v2236 = vadd.f32 %v2170, %v2235
  %v2237 = vpop.f32.mrb[0].mxu0
  %v2238 = vpop.f32.mrb[0].mxu0
  %v2239 = vpop.f32.mrb[0].mxu0
  %2240 = vdwg.mxu0
  %vm2241 = vcmp.ge.f32.partialorder %v2236, 0.0
  %v2242 = vmul.f32 %v2236, 0.1
  %v2243 = vsel %vm2241, %v2236, %v2242
  %2244 = vst [vmem:[%s7] sm:$0xff] %v2243
  // Predicated region
  $region30: #{discriminator_forward.1} parent=0 // pred_check
    _
  $region31: #{discriminator_forward.1} parent=0 // pred_check_branch
    %2246 = sbr.rel (0) target = $region33
  $region32: #{discriminator_forward.1} parent=0 // pred_region
    _
  $region33: #{discriminator_forward.1} parent=0 // pred_fallthru
    _
  // Predicated region
  $region34: #{discriminator_forward.1} parent=0 // pred_check
    _
  $region35: #{discriminator_forward.1} parent=0 // pred_check_branch
    %2248 = sbr.rel (0) target = $region37
  $region36: #{discriminator_forward.1} parent=0 // pred_region
    _
  $region37: #{discriminator_forward.1} parent=0 // pred_fallthru
    _

</llo_original>
